<compile_context>
chip_gen: v5e
topology: v5e:2x2
jax: 0.10.0
libtpu: 0.0.40
codegen_flags: <defaults>
</compile_context>

<pallas_src>
import math

import jax
import jax.numpy as jnp
from jax.experimental import pallas as pl

IN_FEATURES = 32 * 32
H1 = 512        # layer-1 width
H2 = 64         # true layer-2 width
H2_PAD = 128    # padded to a full lane width
OUT = 10        # true output width
OUT_PAD = 128   # padded to a full lane width


def mlp_kernel(x_ref, w1_ref, b1_ref, w2_ref, b2_ref, w3_ref, b3_ref, o_ref):
    # Layer 1: (B, 1024)bf16 @ (1024, 512)bf16 -> f32 acc, + b1 (f32), ReLU.
    h1 = jnp.dot(x_ref[...], w1_ref[...], preferred_element_type=jnp.float32)
    h1 = jnp.maximum(h1 + b1_ref[...], 0.0).astype(jnp.bfloat16)
    # Layer 2: (B, 512)bf16 @ (512, 128)bf16 -> f32, + b2, ReLU. Cols 64..127 are zero pad.
    h2 = jnp.dot(h1, w2_ref[...], preferred_element_type=jnp.float32)
    h2 = jnp.maximum(h2 + b2_ref[...], 0.0).astype(jnp.bfloat16)
    # Layer 3: (B, 128)bf16 @ (128, 128)bf16 -> f32, + b3. Lane-dense (128) unmasked store.
    o_ref[...] = (
        jnp.dot(h2, w3_ref[...], preferred_element_type=jnp.float32) + b3_ref[...]
    )


def linear_forward(x, prepped_params):
    """x: (B, C, H, W) float32 NCHW with C*H*W == 1024. Returns logits (B, 10) f32."""
    w1, b1, w2, b2, w3, b3 = prepped_params
    B = x.shape[0]
    # Same semantics as torch x.view(B, -1); cast activations to bf16 for the MXU.
    x_flat = x.reshape(B, -1).astype(jnp.bfloat16)
    assert x_flat.shape[1] == IN_FEATURES

    def full(a):
        return pl.BlockSpec(a.shape, lambda: (0,) * a.ndim)

    out_padded = pl.pallas_call(
        mlp_kernel,
        out_shape=jax.ShapeDtypeStruct((B, OUT_PAD), jnp.float32),
        in_specs=[
            full(x_flat),
            full(w1), full(b1),
            full(w2), full(b2),
            full(w3), full(b3),
        ],
        out_specs=pl.BlockSpec((B, OUT_PAD), lambda: (0, 0)),
    )(x_flat, w1, b1, w2, b2, w3, b3)
    return out_padded[:, :OUT]


def xavier_uniform(key, fan_in, fan_out):
    # Matches torch.nn.init.xavier_uniform: U(-a, a), a = sqrt(6 / (fan_in + fan_out)).
    limit = math.sqrt(6.0 / (fan_in + fan_out))
    # Stored as (in, out): kernel computes x @ W, equivalent to torch's x @ W_torch.T.
    return jax.random.uniform(key, (fan_in, fan_out), jnp.float32, -limit, limit)


def init_params(key):
    """Raw f32 params, shapes/semantics matching the torch module."""
    k1, k2, k3 = jax.random.split(key, 3)
    w1 = xavier_uniform(k1, IN_FEATURES, H1)
    b1 = jnp.zeros((H1,), jnp.float32)
    w2 = xavier_uniform(k2, H1, H2)
    b2 = jnp.zeros((H2,), jnp.float32)
    w3 = xavier_uniform(k3, H2, OUT)
    b3 = jnp.zeros((OUT,), jnp.float32)
    return (w1, b1, w2, b2, w3, b3)


def prepare_params(params):
    """One-time prep: bf16 weights (half HBM traffic) + lane-pad 64->128 and 10->128."""
    w1, b1, w2, b2, w3, b3 = params
    w1p = w1.astype(jnp.bfloat16)                                          # (1024, 512)
    w2p = jnp.zeros((H1, H2_PAD), jnp.bfloat16).at[:, :H2].set(w2.astype(jnp.bfloat16))
    w3p = jnp.zeros((H2_PAD, OUT_PAD), jnp.bfloat16).at[:H2, :OUT].set(w3.astype(jnp.bfloat16))
    b1p = b1.reshape(1, H1).astype(jnp.float32)
    b2p = jnp.zeros((1, H2_PAD), jnp.float32).at[:, :H2].set(b2.reshape(1, H2))
    b3p = jnp.zeros((1, OUT_PAD), jnp.float32).at[:, :OUT].set(b3.reshape(1, OUT))
    return (w1p, b1p, w2p, b2p, w3p, b3p)


if __name__ == "__main__":
    key = jax.random.PRNGKey(0)
    pkey, xkey = jax.random.split(key)

    params = init_params(pkey)
    n_params = sum(int(p.size) for p in params)
    print(f"number of total parameters for Linear: {n_params}")

    prepped = prepare_params(params)

    # Small NCHW input whose flattened size matches 32*32 = 1024 features.
    x = jax.random.normal(xkey, (2, 1, 32, 32), jnp.float32)

    out = linear_forward(x, prepped)
    out = jax.block_until_ready(out)
    assert out.shape == (2, 10) and out.dtype == jnp.float32

    # Reference check in plain JAX with the identical bf16-weight / f32-accum math.
    w1p, b1p, w2p, b2p, w3p, b3p = prepped
    xf = x.reshape(2, -1).astype(jnp.bfloat16)
    h1 = jnp.maximum(jnp.dot(xf, w1p, preferred_element_type=jnp.float32) + b1p, 0.0)
    h1 = h1.astype(jnp.bfloat16)
    h2 = jnp.maximum(jnp.dot(h1, w2p, preferred_element_type=jnp.float32) + b2p, 0.0)
    h2 = h2.astype(jnp.bfloat16)
    ref = (jnp.dot(h2, w3p, preferred_element_type=jnp.float32) + b3p)[:, :OUT]
    assert jnp.allclose(out, ref, atol=1e-2, rtol=1e-2)

    # Sanity check against the unquantized f32 math (looser tolerance for bf16 weights).
    w1, b1, w2, b2, w3, b3 = params
    xr = x.reshape(2, -1)
    r = jnp.maximum(xr @ w1 + b1, 0.0)
    r = jnp.maximum(r @ w2 + b2, 0.0)
    r = r @ w3 + b3
    assert jnp.allclose(out, r, atol=1e-1, rtol=1e-1)

    print("KERNEL_OK")
</pallas_src>

<mosaic_0001>
module attributes {stable_mosaic.version = 11 : i64} {
  func.func @mlp_kernel(%arg0: memref<2x1024xbf16, #tpu.memory_space<vmem>>, %arg1: memref<1024x512xbf16, #tpu.memory_space<vmem>>, %arg2: memref<1x512xf32, #tpu.memory_space<vmem>>, %arg3: memref<512x128xbf16, #tpu.memory_space<vmem>>, %arg4: memref<1x128xf32, #tpu.memory_space<vmem>>, %arg5: memref<128x128xbf16, #tpu.memory_space<vmem>>, %arg6: memref<1x128xf32, #tpu.memory_space<vmem>>, %arg7: memref<2x128xf32, #tpu.memory_space<vmem>>) attributes {dimension_semantics = [], scalar_prefetch = 0 : i64, scratch_operands = 0 : i64, tpu.core_type = #tpu.core_type<tc>} {
    %c0 = arith.constant 0 : index
    %c0_0 = arith.constant 0 : index
    %0 = vector.load %arg0[%c0, %c0_0] : memref<2x1024xbf16, #tpu.memory_space<vmem>>, vector<2x1024xbf16>
    %c0_1 = arith.constant 0 : index
    %c0_2 = arith.constant 0 : index
    %1 = vector.load %arg1[%c0_1, %c0_2] : memref<1024x512xbf16, #tpu.memory_space<vmem>>, vector<1024x512xbf16>
    %cst = arith.constant dense<0.000000e+00> : vector<2x512xf32>
    %2 = tpu.matmul %0, %1, %cst {dimension_numbers = #tpu.dot_dimension_numbers<[1], [0], [0], [1], [0, 0, 1, 1], [], []>} : vector<2x1024xbf16>, vector<1024x512xbf16>, vector<2x512xf32> -> vector<2x512xf32>
    %c0_3 = arith.constant 0 : index
    %c0_4 = arith.constant 0 : index
    %3 = vector.load %arg2[%c0_3, %c0_4] : memref<1x512xf32, #tpu.memory_space<vmem>>, vector<1x512xf32>
    %4 = vector.broadcast %3 : vector<1x512xf32> to vector<2x512xf32>
    %5 = arith.addf %2, %4 : vector<2x512xf32>
    %cst_5 = arith.constant 0.000000e+00 : f32
    %6 = vector.broadcast %cst_5 : f32 to vector<2x512xf32>
    %7 = arith.maximumf %5, %6 : vector<2x512xf32>
    %8 = arith.truncf %7 : vector<2x512xf32> to vector<2x512xbf16>
    %c0_6 = arith.constant 0 : index
    %c0_7 = arith.constant 0 : index
    %9 = vector.load %arg3[%c0_6, %c0_7] : memref<512x128xbf16, #tpu.memory_space<vmem>>, vector<512x128xbf16>
    %cst_8 = arith.constant dense<0.000000e+00> : vector<2x128xf32>
    %10 = tpu.matmul %8, %9, %cst_8 {dimension_numbers = #tpu.dot_dimension_numbers<[1], [0], [0], [1], [0, 0, 1, 1], [], []>} : vector<2x512xbf16>, vector<512x128xbf16>, vector<2x128xf32> -> vector<2x128xf32>
    %c0_9 = arith.constant 0 : index
    %c0_10 = arith.constant 0 : index
    %11 = vector.load %arg4[%c0_9, %c0_10] : memref<1x128xf32, #tpu.memory_space<vmem>>, vector<1x128xf32>
    %12 = vector.broadcast %11 : vector<1x128xf32> to vector<2x128xf32>
    %13 = arith.addf %10, %12 : vector<2x128xf32>
    %cst_11 = arith.constant 0.000000e+00 : f32
    %14 = vector.broadcast %cst_11 : f32 to vector<2x128xf32>
    %15 = arith.maximumf %13, %14 : vector<2x128xf32>
    %16 = arith.truncf %15 : vector<2x128xf32> to vector<2x128xbf16>
    %c0_12 = arith.constant 0 : index
    %c0_13 = arith.constant 0 : index
    %17 = vector.load %arg5[%c0_12, %c0_13] : memref<128x128xbf16, #tpu.memory_space<vmem>>, vector<128x128xbf16>
    %cst_14 = arith.constant dense<0.000000e+00> : vector<2x128xf32>
    %18 = tpu.matmul %16, %17, %cst_14 {dimension_numbers = #tpu.dot_dimension_numbers<[1], [0], [0], [1], [0, 0, 1, 1], [], []>} : vector<2x128xbf16>, vector<128x128xbf16>, vector<2x128xf32> -> vector<2x128xf32>
    %c0_15 = arith.constant 0 : index
    %c0_16 = arith.constant 0 : index
    %19 = vector.load %arg6[%c0_15, %c0_16] : memref<1x128xf32, #tpu.memory_space<vmem>>, vector<1x128xf32>
    %20 = vector.broadcast %19 : vector<1x128xf32> to vector<2x128xf32>
    %21 = arith.addf %18, %20 : vector<2x128xf32>
    %c0_17 = arith.constant 0 : index
    %c0_18 = arith.constant 0 : index
    %22 = vector.load %arg7[%c0_17, %c0_18] : memref<2x128xf32, #tpu.memory_space<vmem>>, vector<2x128xf32>
    tpu.vector_store %arg7[%c0_17, %c0_18], %21 {strides = array<i32>} : memref<2x128xf32, #tpu.memory_space<vmem>>, vector<2x128xf32>,
    return
  }
}

</mosaic_0001>

<llo_original>
// kernel: tpu_custom_call.1
$region0: #{tpu_custom_call.1}
  #allocation0 [shape = 'u32[]', space=smem, size = 0x4, offset = 0x4, fixed_abs, tag = 'smem constant byte address 0x4 - core index']
  #allocation1 [shape = 'u32[72,128]{1,0:T(1,128)}', space=vmem, size = 0x9000, scoped, tag = 'internal scratch']
  %s0 = inlined_call_operand.hbm [shape: bf16[2,1024], index: 0, kind: input, shape index: {}]
  %s1 = inlined_call_operand.hbm [shape: bf16[1024,512], index: 1, kind: input, shape index: {}]
  %s2 = inlined_call_operand.hbm [shape: f32[1,512], index: 2, kind: input, shape index: {}]
  %s3 = inlined_call_operand.hbm [shape: bf16[512,128], index: 3, kind: input, shape index: {}]
  %s4 = inlined_call_operand.vmem [shape: f32[1,128], index: 4, kind: input, shape index: {}]
  %s5 = inlined_call_operand.hbm [shape: bf16[128,128], index: 5, kind: input, shape index: {}]
  %s6 = inlined_call_operand.vmem [shape: f32[1,128], index: 6, kind: input, shape index: {}]
  %s7 = inlined_call_operand.hbm [shape: f32[2,128], index: 7, kind: output, shape index: {}]
  %s8 = sld [smem:[#allocation0]]
  $region58: #{tpu_custom_call.1} parent=0
    _
  %s10 = ssub.s32 1, %s8
  %s11 = scalar_select 0, %s10, %s8
  $region1: #{tpu_custom_call.1} parent=0
    #allocation2 [shape = 'u8[4096]{0}', space=vmem, size = 0x1000, scoped, tag = 'input window, operand 0, single buffered']
    #allocation3 [shape = 's32[1]{0}', space=sflag, size = 0x4, scoped, tag = 'scoped memory for tpu_custom_call.1']
    #allocation4 [shape = 's32[1]{0}', space=sflag, size = 0x4, scoped, tag = 'scoped memory for tpu_custom_call.1']
    #allocation5 [shape = 'u8[1048576]{0}', space=vmem, size = 0x100000, scoped, tag = 'input window, operand 1, single buffered']
    #allocation6 [shape = 's32[1]{0}', space=sflag, size = 0x4, scoped, tag = 'scoped memory for tpu_custom_call.1']
    #allocation7 [shape = 'u8[2048]{0}', space=vmem, size = 0x800, scoped, tag = 'input window, operand 2, single buffered']
    #allocation8 [shape = 'u8[131072]{0}', space=vmem, size = 0x20000, scoped, tag = 'input window, operand 3, single buffered']
    #allocation9 [shape = 's32[1]{0}', space=sflag, size = 0x4, scoped, tag = 'scoped memory for tpu_custom_call.1']
    #allocation10 [shape = 'u8[32768]{0}', space=vmem, size = 0x8000, scoped, tag = 'input window, operand 5, single buffered']
    #allocation11 [shape = 'u8[1024]{0}', space=vmem, size = 0x400, scoped, tag = 'output window, operand 0, single buffered']
    %12 = vsyncpa [#allocation3], 0
    %13 = vsyncpa [#allocation6], 0
    %14 = vsyncpa [#allocation9], 0
    %15 = vsyncpa [#allocation4], 0
    // Predicated region
    $region2: #{tpu_custom_call.1} parent=1 // pred_check
      _
    $region3: #{tpu_custom_call.1} parent=1 // pred_check_branch
      %17 = sbr.rel (0) target = $region5
    $region4: #{tpu_custom_call.1} parent=1 // pred_region
      %19 = vsyncadd [#allocation3], 0
      %s21 = sshll.u32 %s0, 4
      %s22 = int_to_ptr.hbm [resolvable:$true] %s21
      %s23 = sshll.u32 [#allocation2], 4
      %s24 = int_to_ptr.vmem [resolvable:$true] %s23
      %26 = dma.hbm_to_vmem [thread:$0]  %s22, 128, %s24, [#allocation3]
    $region5: #{tpu_custom_call.1} parent=1 // pred_fallthru
      _
    // Predicated region
    $region6: #{tpu_custom_call.1} parent=1 // pred_check
      _
    $region7: #{tpu_custom_call.1} parent=1 // pred_check_branch
      %28 = sbr.rel (0) target = $region9
    $region8: #{tpu_custom_call.1} parent=1 // pred_region
      %30 = vsyncadd [#allocation6], 0
      %s31 = sshll.u32 %s1, 4
      %s32 = int_to_ptr.hbm [resolvable:$true] %s31
      %s33 = sshll.u32 [#allocation5], 4
      %s34 = int_to_ptr.vmem [resolvable:$true] %s33
      %39 = dma.hbm_to_vmem [thread:$0]  %s32, 32768, %s34, [#allocation6], 256, 256, 16
    $region9: #{tpu_custom_call.1} parent=1 // pred_fallthru
      _
    // Predicated region
    $region10: #{tpu_custom_call.1} parent=1 // pred_check
      _
    $region11: #{tpu_custom_call.1} parent=1 // pred_check_branch
      %41 = sbr.rel (0) target = $region13
    $region12: #{tpu_custom_call.1} parent=1 // pred_region
      %43 = vsyncadd [#allocation6], 0
      %s45 = sshll.u32 %s2, 4
      %s46 = int_to_ptr.hbm [resolvable:$true] %s45
      %s47 = sshll.u32 [#allocation7], 4
      %s48 = int_to_ptr.vmem [resolvable:$true] %s47
      %50 = dma.hbm_to_vmem [thread:$0]  %s46, 64, %s48, [#allocation6]
    $region13: #{tpu_custom_call.1} parent=1 // pred_fallthru
      _
    // Predicated region
    $region14: #{tpu_custom_call.1} parent=1 // pred_check
      _
    $region15: #{tpu_custom_call.1} parent=1 // pred_check_branch
      %52 = sbr.rel (0) target = $region17
    $region16: #{tpu_custom_call.1} parent=1 // pred_region
      %54 = vsyncadd [#allocation9], 0
      %s55 = sshll.u32 %s3, 4
      %s56 = int_to_ptr.hbm [resolvable:$true] %s55
      %s57 = sshll.u32 [#allocation8], 4
      %s58 = int_to_ptr.vmem [resolvable:$true] %s57
      %63 = dma.hbm_to_vmem [thread:$0]  %s56, 4096, %s58, [#allocation9], 64, 64, 4
    $region17: #{tpu_custom_call.1} parent=1 // pred_fallthru
      _
    // Predicated region
    $region18: #{tpu_custom_call.1} parent=1 // pred_check
      _
    $region19: #{tpu_custom_call.1} parent=1 // pred_check_branch
      %65 = sbr.rel (0) target = $region21
    $region20: #{tpu_custom_call.1} parent=1 // pred_region
      _
    $region21: #{tpu_custom_call.1} parent=1 // pred_fallthru
      _
    // Predicated region
    $region22: #{tpu_custom_call.1} parent=1 // pred_check
      _
    $region23: #{tpu_custom_call.1} parent=1 // pred_check_branch
      %67 = sbr.rel (0) target = $region25
    $region24: #{tpu_custom_call.1} parent=1 // pred_region
      %69 = vsyncadd [#allocation9], 0
      %s70 = sshll.u32 %s5, 4
      %s71 = int_to_ptr.hbm [resolvable:$true] %s70
      %s72 = sshll.u32 [#allocation10], 4
      %s73 = int_to_ptr.vmem [resolvable:$true] %s72
      %78 = dma.hbm_to_vmem [thread:$0]  %s71, 1024, %s73, [#allocation9], 64, 64, 4
    $region25: #{tpu_custom_call.1} parent=1 // pred_fallthru
      _
    // Predicated region
    $region26: #{tpu_custom_call.1} parent=1 // pred_check
      _
    $region27: #{tpu_custom_call.1} parent=1 // pred_check_branch
      %80 = sbr.rel (0) target = $region29
    $region28: #{tpu_custom_call.1} parent=1 // pred_region
      _
    $region29: #{tpu_custom_call.1} parent=1 // pred_fallthru
      _
    // Predicated region
    $region30: #{tpu_custom_call.1} parent=1 // pred_check
      _
    $region31: #{tpu_custom_call.1} parent=1 // pred_check_branch
      %82 = sbr.rel (0) target = $region33
    $region32: #{tpu_custom_call.1} parent=1 // pred_region
      %84 = dma.done [#allocation3], 128
    $region33: #{tpu_custom_call.1} parent=1 // pred_fallthru
      _
    // Predicated region
    $region34: #{tpu_custom_call.1} parent=1 // pred_check
      _
    $region35: #{tpu_custom_call.1} parent=1 // pred_check_branch
      %86 = sbr.rel (0) target = $region37
    $region36: #{tpu_custom_call.1} parent=1 // pred_region
      %88 = dma.done [#allocation6], 32768
    $region37: #{tpu_custom_call.1} parent=1 // pred_fallthru
      _
    // Predicated region
    $region38: #{tpu_custom_call.1} parent=1 // pred_check
      _
    $region39: #{tpu_custom_call.1} parent=1 // pred_check_branch
      %90 = sbr.rel (0) target = $region41
    $region40: #{tpu_custom_call.1} parent=1 // pred_region
      %92 = dma.done [#allocation6], 64
    $region41: #{tpu_custom_call.1} parent=1 // pred_fallthru
      _
    // Predicated region
    $region42: #{tpu_custom_call.1} parent=1 // pred_check
      _
    $region43: #{tpu_custom_call.1} parent=1 // pred_check_branch
      %94 = sbr.rel (0) target = $region45
    $region44: #{tpu_custom_call.1} parent=1 // pred_region
      %96 = dma.done [#allocation9], 4096
    $region45: #{tpu_custom_call.1} parent=1 // pred_fallthru
      _
    // Predicated region
    $region46: #{tpu_custom_call.1} parent=1 // pred_check
      _
    $region47: #{tpu_custom_call.1} parent=1 // pred_check_branch
      %98 = sbr.rel (0) target = $region49
    $region48: #{tpu_custom_call.1} parent=1 // pred_region
      %100 = dma.done [#allocation9], 1024
    $region49: #{tpu_custom_call.1} parent=1 // pred_fallthru
      _
    %v101 = vld [vmem:[#allocation2] sm:$0xff]
    %v102 = vld [vmem:[#allocation5] sm:$0xff]
    %v103 = vld [vmem:[#allocation5 + $0x8] sm:$0xff]
    %v104 = vld [vmem:[#allocation5 + $0x10] sm:$0xff]
    %v105 = vld [vmem:[#allocation5 + $0x18] sm:$0xff]
    %v106 = vld [vmem:[#allocation5 + $0x20] sm:$0xff]
    %v107 = vld [vmem:[#allocation5 + $0x28] sm:$0xff]
    %v108 = vld [vmem:[#allocation5 + $0x30] sm:$0xff]
    %v109 = vld [vmem:[#allocation5 + $0x38] sm:$0xff]
    %v110 = vld [vmem:[#allocation5 + $0x40] sm:$0xff]
    %v111 = vld [vmem:[#allocation5 + $0x48] sm:$0xff]
    %v112 = vld [vmem:[#allocation5 + $0x50] sm:$0xff]
    %v113 = vld [vmem:[#allocation5 + $0x58] sm:$0xff]
    %v114 = vld [vmem:[#allocation5 + $0x60] sm:$0xff]
    %v115 = vld [vmem:[#allocation5 + $0x68] sm:$0xff]
    %v116 = vld [vmem:[#allocation5 + $0x70] sm:$0xff]
    %v117 = vld [vmem:[#allocation5 + $0x78] sm:$0xff]
    %v118 = vld [vmem:[#allocation5 + $0x80] sm:$0xff]
    %v119 = vld [vmem:[#allocation5 + $0x88] sm:$0xff]
    %v120 = vld [vmem:[#allocation5 + $0x90] sm:$0xff]
    %v121 = vld [vmem:[#allocation5 + $0x98] sm:$0xff]
    %v122 = vld [vmem:[#allocation5 + $0xa0] sm:$0xff]
    %v123 = vld [vmem:[#allocation5 + $0xa8] sm:$0xff]
    %v124 = vld [vmem:[#allocation5 + $0xb0] sm:$0xff]
    %v125 = vld [vmem:[#allocation5 + $0xb8] sm:$0xff]
    %v126 = vld [vmem:[#allocation5 + $0xc0] sm:$0xff]
    %v127 = vld [vmem:[#allocation5 + $0xc8] sm:$0xff]
    %v128 = vld [vmem:[#allocation5 + $0xd0] sm:$0xff]
    %v129 = vld [vmem:[#allocation5 + $0xd8] sm:$0xff]
    %v130 = vld [vmem:[#allocation5 + $0xe0] sm:$0xff]
    %v131 = vld [vmem:[#allocation5 + $0xe8] sm:$0xff]
    %v132 = vld [vmem:[#allocation5 + $0xf0] sm:$0xff]
    %v133 = vld [vmem:[#allocation5 + $0xf8] sm:$0xff]
    %v134 = vld [vmem:[#allocation5 + $0x100] sm:$0xff]
    %v135 = vld [vmem:[#allocation5 + $0x108] sm:$0xff]
    %v136 = vld [vmem:[#allocation5 + $0x110] sm:$0xff]
    %v137 = vld [vmem:[#allocation5 + $0x118] sm:$0xff]
    %v138 = vld [vmem:[#allocation5 + $0x120] sm:$0xff]
    %v139 = vld [vmem:[#allocation5 + $0x128] sm:$0xff]
    %v140 = vld [vmem:[#allocation5 + $0x130] sm:$0xff]
    %v141 = vld [vmem:[#allocation5 + $0x138] sm:$0xff]
    %v142 = vld [vmem:[#allocation5 + $0x140] sm:$0xff]
    %v143 = vld [vmem:[#allocation5 + $0x148] sm:$0xff]
    %v144 = vld [vmem:[#allocation5 + $0x150] sm:$0xff]
    %v145 = vld [vmem:[#allocation5 + $0x158] sm:$0xff]
    %v146 = vld [vmem:[#allocation5 + $0x160] sm:$0xff]
    %v147 = vld [vmem:[#allocation5 + $0x168] sm:$0xff]
    %v148 = vld [vmem:[#allocation5 + $0x170] sm:$0xff]
    %v149 = vld [vmem:[#allocation5 + $0x178] sm:$0xff]
    %v150 = vld [vmem:[#allocation5 + $0x180] sm:$0xff]
    %v151 = vld [vmem:[#allocation5 + $0x188] sm:$0xff]
    %v152 = vld [vmem:[#allocation5 + $0x190] sm:$0xff]
    %v153 = vld [vmem:[#allocation5 + $0x198] sm:$0xff]
    %v154 = vld [vmem:[#allocation5 + $0x1a0] sm:$0xff]
    %v155 = vld [vmem:[#allocation5 + $0x1a8] sm:$0xff]
    %v156 = vld [vmem:[#allocation5 + $0x1b0] sm:$0xff]
    %v157 = vld [vmem:[#allocation5 + $0x1b8] sm:$0xff]
    %v158 = vld [vmem:[#allocation5 + $0x1c0] sm:$0xff]
    %v159 = vld [vmem:[#allocation5 + $0x1c8] sm:$0xff]
    %v160 = vld [vmem:[#allocation5 + $0x1d0] sm:$0xff]
    %v161 = vld [vmem:[#allocation5 + $0x1d8] sm:$0xff]
    %v162 = vld [vmem:[#allocation5 + $0x1e0] sm:$0xff]
    %v163 = vld [vmem:[#allocation5 + $0x1e8] sm:$0xff]
    %v164 = vld [vmem:[#allocation5 + $0x1f0] sm:$0xff]
    %v165 = vld [vmem:[#allocation5 + $0x1f8] sm:$0xff]
    %v166 = vld [vmem:[#allocation5 + $0x200] sm:$0xff]
    %v167 = vld [vmem:[#allocation5 + $0x208] sm:$0xff]
    %v168 = vld [vmem:[#allocation5 + $0x210] sm:$0xff]
    %v169 = vld [vmem:[#allocation5 + $0x218] sm:$0xff]
    %v170 = vld [vmem:[#allocation5 + $0x220] sm:$0xff]
    %v171 = vld [vmem:[#allocation5 + $0x228] sm:$0xff]
    %v172 = vld [vmem:[#allocation5 + $0x230] sm:$0xff]
    %v173 = vld [vmem:[#allocation5 + $0x238] sm:$0xff]
    %v174 = vld [vmem:[#allocation5 + $0x240] sm:$0xff]
    %v175 = vld [vmem:[#allocation5 + $0x248] sm:$0xff]
    %v176 = vld [vmem:[#allocation5 + $0x250] sm:$0xff]
    %v177 = vld [vmem:[#allocation5 + $0x258] sm:$0xff]
    %v178 = vld [vmem:[#allocation5 + $0x260] sm:$0xff]
    %v179 = vld [vmem:[#allocation5 + $0x268] sm:$0xff]
    %v180 = vld [vmem:[#allocation5 + $0x270] sm:$0xff]
    %v181 = vld [vmem:[#allocation5 + $0x278] sm:$0xff]
    %v182 = vld [vmem:[#allocation5 + $0x280] sm:$0xff]
    %v183 = vld [vmem:[#allocation5 + $0x288] sm:$0xff]
    %v184 = vld [vmem:[#allocation5 + $0x290] sm:$0xff]
    %v185 = vld [vmem:[#allocation5 + $0x298] sm:$0xff]
    %v186 = vld [vmem:[#allocation5 + $0x2a0] sm:$0xff]
    %v187 = vld [vmem:[#allocation5 + $0x2a8] sm:$0xff]
    %v188 = vld [vmem:[#allocation5 + $0x2b0] sm:$0xff]
    %v189 = vld [vmem:[#allocation5 + $0x2b8] sm:$0xff]
    %v190 = vld [vmem:[#allocation5 + $0x2c0] sm:$0xff]
    %v191 = vld [vmem:[#allocation5 + $0x2c8] sm:$0xff]
    %v192 = vld [vmem:[#allocation5 + $0x2d0] sm:$0xff]
    %v193 = vld [vmem:[#allocation5 + $0x2d8] sm:$0xff]
    %v194 = vld [vmem:[#allocation5 + $0x2e0] sm:$0xff]
    %v195 = vld [vmem:[#allocation5 + $0x2e8] sm:$0xff]
    %v196 = vld [vmem:[#allocation5 + $0x2f0] sm:$0xff]
    %v197 = vld [vmem:[#allocation5 + $0x2f8] sm:$0xff]
    %v198 = vld [vmem:[#allocation5 + $0x300] sm:$0xff]
    %v199 = vld [vmem:[#allocation5 + $0x308] sm:$0xff]
    %v200 = vld [vmem:[#allocation5 + $0x310] sm:$0xff]
    %v201 = vld [vmem:[#allocation5 + $0x318] sm:$0xff]
    %v202 = vld [vmem:[#allocation5 + $0x320] sm:$0xff]
    %v203 = vld [vmem:[#allocation5 + $0x328] sm:$0xff]
    %v204 = vld [vmem:[#allocation5 + $0x330] sm:$0xff]
    %v205 = vld [vmem:[#allocation5 + $0x338] sm:$0xff]
    %v206 = vld [vmem:[#allocation5 + $0x340] sm:$0xff]
    %v207 = vld [vmem:[#allocation5 + $0x348] sm:$0xff]
    %v208 = vld [vmem:[#allocation5 + $0x350] sm:$0xff]
    %v209 = vld [vmem:[#allocation5 + $0x358] sm:$0xff]
    %v210 = vld [vmem:[#allocation5 + $0x360] sm:$0xff]
    %v211 = vld [vmem:[#allocation5 + $0x368] sm:$0xff]
    %v212 = vld [vmem:[#allocation5 + $0x370] sm:$0xff]
    %v213 = vld [vmem:[#allocation5 + $0x378] sm:$0xff]
    %v214 = vld [vmem:[#allocation5 + $0x380] sm:$0xff]
    %v215 = vld [vmem:[#allocation5 + $0x388] sm:$0xff]
    %v216 = vld [vmem:[#allocation5 + $0x390] sm:$0xff]
    %v217 = vld [vmem:[#allocation5 + $0x398] sm:$0xff]
    %v218 = vld [vmem:[#allocation5 + $0x3a0] sm:$0xff]
    %v219 = vld [vmem:[#allocation5 + $0x3a8] sm:$0xff]
    %v220 = vld [vmem:[#allocation5 + $0x3b0] sm:$0xff]
    %v221 = vld [vmem:[#allocation5 + $0x3b8] sm:$0xff]
    %v222 = vld [vmem:[#allocation5 + $0x3c0] sm:$0xff]
    %v223 = vld [vmem:[#allocation5 + $0x3c8] sm:$0xff]
    %v224 = vld [vmem:[#allocation5 + $0x3d0] sm:$0xff]
    %v225 = vld [vmem:[#allocation5 + $0x3d8] sm:$0xff]
    %v226 = vld [vmem:[#allocation5 + $0x3e0] sm:$0xff]
    %v227 = vld [vmem:[#allocation5 + $0x3e8] sm:$0xff]
    %v228 = vld [vmem:[#allocation5 + $0x3f0] sm:$0xff]
    %v229 = vld [vmem:[#allocation5 + $0x3f8] sm:$0xff]
    %v230 = vld [vmem:[#allocation5 + $0x400] sm:$0xff]
    %v231 = vld [vmem:[#allocation5 + $0x408] sm:$0xff]
    %v232 = vld [vmem:[#allocation5 + $0x410] sm:$0xff]
    %v233 = vld [vmem:[#allocation5 + $0x418] sm:$0xff]
    %v234 = vld [vmem:[#allocation5 + $0x420] sm:$0xff]
    %v235 = vld [vmem:[#allocation5 + $0x428] sm:$0xff]
    %v236 = vld [vmem:[#allocation5 + $0x430] sm:$0xff]
    %v237 = vld [vmem:[#allocation5 + $0x438] sm:$0xff]
    %v238 = vld [vmem:[#allocation5 + $0x440] sm:$0xff]
    %v239 = vld [vmem:[#allocation5 + $0x448] sm:$0xff]
    %v240 = vld [vmem:[#allocation5 + $0x450] sm:$0xff]
    %v241 = vld [vmem:[#allocation5 + $0x458] sm:$0xff]
    %v242 = vld [vmem:[#allocation5 + $0x460] sm:$0xff]
    %v243 = vld [vmem:[#allocation5 + $0x468] sm:$0xff]
    %v244 = vld [vmem:[#allocation5 + $0x470] sm:$0xff]
    %v245 = vld [vmem:[#allocation5 + $0x478] sm:$0xff]
    %v246 = vld [vmem:[#allocation5 + $0x480] sm:$0xff]
    %v247 = vld [vmem:[#allocation5 + $0x488] sm:$0xff]
    %v248 = vld [vmem:[#allocation5 + $0x490] sm:$0xff]
    %v249 = vld [vmem:[#allocation5 + $0x498] sm:$0xff]
    %v250 = vld [vmem:[#allocation5 + $0x4a0] sm:$0xff]
    %v251 = vld [vmem:[#allocation5 + $0x4a8] sm:$0xff]
    %v252 = vld [vmem:[#allocation5 + $0x4b0] sm:$0xff]
    %v253 = vld [vmem:[#allocation5 + $0x4b8] sm:$0xff]
    %v254 = vld [vmem:[#allocation5 + $0x4c0] sm:$0xff]
    %v255 = vld [vmem:[#allocation5 + $0x4c8] sm:$0xff]
    %v256 = vld [vmem:[#allocation5 + $0x4d0] sm:$0xff]
    %v257 = vld [vmem:[#allocation5 + $0x4d8] sm:$0xff]
    %v258 = vld [vmem:[#allocation5 + $0x4e0] sm:$0xff]
    %v259 = vld [vmem:[#allocation5 + $0x4e8] sm:$0xff]
    %v260 = vld [vmem:[#allocation5 + $0x4f0] sm:$0xff]
    %v261 = vld [vmem:[#allocation5 + $0x4f8] sm:$0xff]
    %v262 = vld [vmem:[#allocation5 + $0x500] sm:$0xff]
    %v263 = vld [vmem:[#allocation5 + $0x508] sm:$0xff]
    %v264 = vld [vmem:[#allocation5 + $0x510] sm:$0xff]
    %v265 = vld [vmem:[#allocation5 + $0x518] sm:$0xff]
    %v266 = vld [vmem:[#allocation5 + $0x520] sm:$0xff]
    %v267 = vld [vmem:[#allocation5 + $0x528] sm:$0xff]
    %v268 = vld [vmem:[#allocation5 + $0x530] sm:$0xff]
    %v269 = vld [vmem:[#allocation5 + $0x538] sm:$0xff]
    %v270 = vld [vmem:[#allocation5 + $0x540] sm:$0xff]
    %v271 = vld [vmem:[#allocation5 + $0x548] sm:$0xff]
    %v272 = vld [vmem:[#allocation5 + $0x550] sm:$0xff]
    %v273 = vld [vmem:[#allocation5 + $0x558] sm:$0xff]
    %v274 = vld [vmem:[#allocation5 + $0x560] sm:$0xff]
    %v275 = vld [vmem:[#allocation5 + $0x568] sm:$0xff]
    %v276 = vld [vmem:[#allocation5 + $0x570] sm:$0xff]
    %v277 = vld [vmem:[#allocation5 + $0x578] sm:$0xff]
    %v278 = vld [vmem:[#allocation5 + $0x580] sm:$0xff]
    %v279 = vld [vmem:[#allocation5 + $0x588] sm:$0xff]
    %v280 = vld [vmem:[#allocation5 + $0x590] sm:$0xff]
    %v281 = vld [vmem:[#allocation5 + $0x598] sm:$0xff]
    %v282 = vld [vmem:[#allocation5 + $0x5a0] sm:$0xff]
    %v283 = vld [vmem:[#allocation5 + $0x5a8] sm:$0xff]
    %v284 = vld [vmem:[#allocation5 + $0x5b0] sm:$0xff]
    %v285 = vld [vmem:[#allocation5 + $0x5b8] sm:$0xff]
    %v286 = vld [vmem:[#allocation5 + $0x5c0] sm:$0xff]
    %v287 = vld [vmem:[#allocation5 + $0x5c8] sm:$0xff]
    %v288 = vld [vmem:[#allocation5 + $0x5d0] sm:$0xff]
    %v289 = vld [vmem:[#allocation5 + $0x5d8] sm:$0xff]
    %v290 = vld [vmem:[#allocation5 + $0x5e0] sm:$0xff]
    %v291 = vld [vmem:[#allocation5 + $0x5e8] sm:$0xff]
    %v292 = vld [vmem:[#allocation5 + $0x5f0] sm:$0xff]
    %v293 = vld [vmem:[#allocation5 + $0x5f8] sm:$0xff]
    %v294 = vld [vmem:[#allocation5 + $0x600] sm:$0xff]
    %v295 = vld [vmem:[#allocation5 + $0x608] sm:$0xff]
    %v296 = vld [vmem:[#allocation5 + $0x610] sm:$0xff]
    %v297 = vld [vmem:[#allocation5 + $0x618] sm:$0xff]
    %v298 = vld [vmem:[#allocation5 + $0x620] sm:$0xff]
    %v299 = vld [vmem:[#allocation5 + $0x628] sm:$0xff]
    %v300 = vld [vmem:[#allocation5 + $0x630] sm:$0xff]
    %v301 = vld [vmem:[#allocation5 + $0x638] sm:$0xff]
    %v302 = vld [vmem:[#allocation5 + $0x640] sm:$0xff]
    %v303 = vld [vmem:[#allocation5 + $0x648] sm:$0xff]
    %v304 = vld [vmem:[#allocation5 + $0x650] sm:$0xff]
    %v305 = vld [vmem:[#allocation5 + $0x658] sm:$0xff]
    %v306 = vld [vmem:[#allocation5 + $0x660] sm:$0xff]
    %v307 = vld [vmem:[#allocation5 + $0x668] sm:$0xff]
    %v308 = vld [vmem:[#allocation5 + $0x670] sm:$0xff]
    %v309 = vld [vmem:[#allocation5 + $0x678] sm:$0xff]
    %v310 = vld [vmem:[#allocation5 + $0x680] sm:$0xff]
    %v311 = vld [vmem:[#allocation5 + $0x688] sm:$0xff]
    %v312 = vld [vmem:[#allocation5 + $0x690] sm:$0xff]
    %v313 = vld [vmem:[#allocation5 + $0x698] sm:$0xff]
    %v314 = vld [vmem:[#allocation5 + $0x6a0] sm:$0xff]
    %v315 = vld [vmem:[#allocation5 + $0x6a8] sm:$0xff]
    %v316 = vld [vmem:[#allocation5 + $0x6b0] sm:$0xff]
    %v317 = vld [vmem:[#allocation5 + $0x6b8] sm:$0xff]
    %v318 = vld [vmem:[#allocation5 + $0x6c0] sm:$0xff]
    %v319 = vld [vmem:[#allocation5 + $0x6c8] sm:$0xff]
    %v320 = vld [vmem:[#allocation5 + $0x6d0] sm:$0xff]
    %v321 = vld [vmem:[#allocation5 + $0x6d8] sm:$0xff]
    %v322 = vld [vmem:[#allocation5 + $0x6e0] sm:$0xff]
    %v323 = vld [vmem:[#allocation5 + $0x6e8] sm:$0xff]
    %v324 = vld [vmem:[#allocation5 + $0x6f0] sm:$0xff]
    %v325 = vld [vmem:[#allocation5 + $0x6f8] sm:$0xff]
    %v326 = vld [vmem:[#allocation5 + $0x700] sm:$0xff]
    %v327 = vld [vmem:[#allocation5 + $0x708] sm:$0xff]
    %v328 = vld [vmem:[#allocation5 + $0x710] sm:$0xff]
    %v329 = vld [vmem:[#allocation5 + $0x718] sm:$0xff]
    %v330 = vld [vmem:[#allocation5 + $0x720] sm:$0xff]
    %v331 = vld [vmem:[#allocation5 + $0x728] sm:$0xff]
    %v332 = vld [vmem:[#allocation5 + $0x730] sm:$0xff]
    %v333 = vld [vmem:[#allocation5 + $0x738] sm:$0xff]
    %v334 = vld [vmem:[#allocation5 + $0x740] sm:$0xff]
    %v335 = vld [vmem:[#allocation5 + $0x748] sm:$0xff]
    %v336 = vld [vmem:[#allocation5 + $0x750] sm:$0xff]
    %v337 = vld [vmem:[#allocation5 + $0x758] sm:$0xff]
    %v338 = vld [vmem:[#allocation5 + $0x760] sm:$0xff]
    %v339 = vld [vmem:[#allocation5 + $0x768] sm:$0xff]
    %v340 = vld [vmem:[#allocation5 + $0x770] sm:$0xff]
    %v341 = vld [vmem:[#allocation5 + $0x778] sm:$0xff]
    %v342 = vld [vmem:[#allocation5 + $0x780] sm:$0xff]
    %v343 = vld [vmem:[#allocation5 + $0x788] sm:$0xff]
    %v344 = vld [vmem:[#allocation5 + $0x790] sm:$0xff]
    %v345 = vld [vmem:[#allocation5 + $0x798] sm:$0xff]
    %v346 = vld [vmem:[#allocation5 + $0x7a0] sm:$0xff]
    %v347 = vld [vmem:[#allocation5 + $0x7a8] sm:$0xff]
    %v348 = vld [vmem:[#allocation5 + $0x7b0] sm:$0xff]
    %v349 = vld [vmem:[#allocation5 + $0x7b8] sm:$0xff]
    %v350 = vld [vmem:[#allocation5 + $0x7c0] sm:$0xff]
    %v351 = vld [vmem:[#allocation5 + $0x7c8] sm:$0xff]
    %v352 = vld [vmem:[#allocation5 + $0x7d0] sm:$0xff]
    %v353 = vld [vmem:[#allocation5 + $0x7d8] sm:$0xff]
    %v354 = vld [vmem:[#allocation5 + $0x7e0] sm:$0xff]
    %v355 = vld [vmem:[#allocation5 + $0x7e8] sm:$0xff]
    %v356 = vld [vmem:[#allocation5 + $0x7f0] sm:$0xff]
    %v357 = vld [vmem:[#allocation5 + $0x7f8] sm:$0xff]
    %v358 = vld [vmem:[#allocation7] sm:$0xf]
    %v360 = vperm.slane %v358, 0
    %v361 = vperm.slane %v358, 1
    %v362 = vperm.slane %v358, 2
    %v363 = vperm.slane %v358, 3
    %369 = vst [vmem:[#allocation1] ss:$9 sm:$0xff] %v101
    %v370 = vld [vmem:[#allocation1] sm:$0xff]
    %v371 = vld [vmem:[#allocation1 + $0x9] sm:$0xff]
    %v372 = vld [vmem:[#allocation1 + $0x12] sm:$0xff]
    %v373 = vld [vmem:[#allocation1 + $0x1b] sm:$0xff]
    %v374 = vld [vmem:[#allocation1 + $0x24] sm:$0xff]
    %v375 = vld [vmem:[#allocation1 + $0x2d] sm:$0xff]
    %v376 = vld [vmem:[#allocation1 + $0x36] sm:$0xff]
    %v377 = vld [vmem:[#allocation1 + $0x3f] sm:$0xff]
    %v642 = vunpack.c.l.b16 %v102
    %v643 = vunpack.c.h.b16 %v102
    %v644 = vunpack.c.l.b16 %v103
    %v645 = vunpack.c.h.b16 %v103
    %v646 = vunpack.c.l.b16 %v104
    %v647 = vunpack.c.h.b16 %v104
    %v648 = vunpack.c.l.b16 %v105
    %v649 = vunpack.c.h.b16 %v105
    %v650 = vunpack.c.l.b16 %v106
    %v651 = vunpack.c.h.b16 %v106
    %v652 = vunpack.c.l.b16 %v107
    %v653 = vunpack.c.h.b16 %v107
    %v654 = vunpack.c.l.b16 %v108
    %v655 = vunpack.c.h.b16 %v108
    %v656 = vunpack.c.l.b16 %v109
    %v657 = vunpack.c.h.b16 %v109
    %v658 = vunpack.c.l.b16 %v110
    %v659 = vunpack.c.h.b16 %v110
    %v660 = vunpack.c.l.b16 %v111
    %v661 = vunpack.c.h.b16 %v111
    %v662 = vunpack.c.l.b16 %v112
    %v663 = vunpack.c.h.b16 %v112
    %v664 = vunpack.c.l.b16 %v113
    %v665 = vunpack.c.h.b16 %v113
    %v666 = vunpack.c.l.b16 %v114
    %v667 = vunpack.c.h.b16 %v114
    %v668 = vunpack.c.l.b16 %v115
    %v669 = vunpack.c.h.b16 %v115
    %v670 = vunpack.c.l.b16 %v116
    %v671 = vunpack.c.h.b16 %v116
    %v672 = vunpack.c.l.b16 %v117
    %v673 = vunpack.c.h.b16 %v117
    %v674 = vunpack.c.l.b16 %v118
    %v675 = vunpack.c.h.b16 %v118
    %v676 = vunpack.c.l.b16 %v119
    %v677 = vunpack.c.h.b16 %v119
    %v678 = vunpack.c.l.b16 %v120
    %v679 = vunpack.c.h.b16 %v120
    %v680 = vunpack.c.l.b16 %v121
    %v681 = vunpack.c.h.b16 %v121
    %v682 = vunpack.c.l.b16 %v122
    %v683 = vunpack.c.h.b16 %v122
    %v684 = vunpack.c.l.b16 %v123
    %v685 = vunpack.c.h.b16 %v123
    %v686 = vunpack.c.l.b16 %v124
    %v687 = vunpack.c.h.b16 %v124
    %v688 = vunpack.c.l.b16 %v125
    %v689 = vunpack.c.h.b16 %v125
    %v690 = vunpack.c.l.b16 %v126
    %v691 = vunpack.c.h.b16 %v126
    %v692 = vunpack.c.l.b16 %v127
    %v693 = vunpack.c.h.b16 %v127
    %v694 = vunpack.c.l.b16 %v128
    %v695 = vunpack.c.h.b16 %v128
    %v696 = vunpack.c.l.b16 %v129
    %v697 = vunpack.c.h.b16 %v129
    %v698 = vunpack.c.l.b16 %v130
    %v699 = vunpack.c.h.b16 %v130
    %v700 = vunpack.c.l.b16 %v131
    %v701 = vunpack.c.h.b16 %v131
    %v702 = vunpack.c.l.b16 %v132
    %v703 = vunpack.c.h.b16 %v132
    %v704 = vunpack.c.l.b16 %v133
    %v705 = vunpack.c.h.b16 %v133
    %v706 = vunpack.c.l.b16 %v134
    %v707 = vunpack.c.h.b16 %v134
    %v708 = vunpack.c.l.b16 %v135
    %v709 = vunpack.c.h.b16 %v135
    %v710 = vunpack.c.l.b16 %v136
    %v711 = vunpack.c.h.b16 %v136
    %v712 = vunpack.c.l.b16 %v137
    %v713 = vunpack.c.h.b16 %v137
    %v714 = vunpack.c.l.b16 %v138
    %v715 = vunpack.c.h.b16 %v138
    %v716 = vunpack.c.l.b16 %v139
    %v717 = vunpack.c.h.b16 %v139
    %v718 = vunpack.c.l.b16 %v140
    %v719 = vunpack.c.h.b16 %v140
    %v720 = vunpack.c.l.b16 %v141
    %v721 = vunpack.c.h.b16 %v141
    %v722 = vunpack.c.l.b16 %v142
    %v723 = vunpack.c.h.b16 %v142
    %v724 = vunpack.c.l.b16 %v143
    %v725 = vunpack.c.h.b16 %v143
    %v726 = vunpack.c.l.b16 %v144
    %v727 = vunpack.c.h.b16 %v144
    %v728 = vunpack.c.l.b16 %v145
    %v729 = vunpack.c.h.b16 %v145
    %v730 = vunpack.c.l.b16 %v146
    %v731 = vunpack.c.h.b16 %v146
    %v732 = vunpack.c.l.b16 %v147
    %v733 = vunpack.c.h.b16 %v147
    %v734 = vunpack.c.l.b16 %v148
    %v735 = vunpack.c.h.b16 %v148
    %v736 = vunpack.c.l.b16 %v149
    %v737 = vunpack.c.h.b16 %v149
    %v738 = vunpack.c.l.b16 %v150
    %v739 = vunpack.c.h.b16 %v150
    %v740 = vunpack.c.l.b16 %v151
    %v741 = vunpack.c.h.b16 %v151
    %v742 = vunpack.c.l.b16 %v152
    %v743 = vunpack.c.h.b16 %v152
    %v744 = vunpack.c.l.b16 %v153
    %v745 = vunpack.c.h.b16 %v153
    %v746 = vunpack.c.l.b16 %v154
    %v747 = vunpack.c.h.b16 %v154
    %v748 = vunpack.c.l.b16 %v155
    %v749 = vunpack.c.h.b16 %v155
    %v750 = vunpack.c.l.b16 %v156
    %v751 = vunpack.c.h.b16 %v156
    %v752 = vunpack.c.l.b16 %v157
    %v753 = vunpack.c.h.b16 %v157
    %v754 = vunpack.c.l.b16 %v158
    %v755 = vunpack.c.h.b16 %v158
    %v756 = vunpack.c.l.b16 %v159
    %v757 = vunpack.c.h.b16 %v159
    %v758 = vunpack.c.l.b16 %v160
    %v759 = vunpack.c.h.b16 %v160
    %v760 = vunpack.c.l.b16 %v161
    %v761 = vunpack.c.h.b16 %v161
    %v762 = vunpack.c.l.b16 %v162
    %v763 = vunpack.c.h.b16 %v162
    %v764 = vunpack.c.l.b16 %v163
    %v765 = vunpack.c.h.b16 %v163
    %v766 = vunpack.c.l.b16 %v164
    %v767 = vunpack.c.h.b16 %v164
    %v768 = vunpack.c.l.b16 %v165
    %v769 = vunpack.c.h.b16 %v165
    %v770 = vunpack.c.l.b16 %v166
    %v771 = vunpack.c.h.b16 %v166
    %v772 = vunpack.c.l.b16 %v167
    %v773 = vunpack.c.h.b16 %v167
    %v774 = vunpack.c.l.b16 %v168
    %v775 = vunpack.c.h.b16 %v168
    %v776 = vunpack.c.l.b16 %v169
    %v777 = vunpack.c.h.b16 %v169
    %v778 = vunpack.c.l.b16 %v170
    %v779 = vunpack.c.h.b16 %v170
    %v780 = vunpack.c.l.b16 %v171
    %v781 = vunpack.c.h.b16 %v171
    %v782 = vunpack.c.l.b16 %v172
    %v783 = vunpack.c.h.b16 %v172
    %v784 = vunpack.c.l.b16 %v173
    %v785 = vunpack.c.h.b16 %v173
    %v786 = vunpack.c.l.b16 %v174
    %v787 = vunpack.c.h.b16 %v174
    %v788 = vunpack.c.l.b16 %v175
    %v789 = vunpack.c.h.b16 %v175
    %v790 = vunpack.c.l.b16 %v176
    %v791 = vunpack.c.h.b16 %v176
    %v792 = vunpack.c.l.b16 %v177
    %v793 = vunpack.c.h.b16 %v177
    %v794 = vunpack.c.l.b16 %v178
    %v795 = vunpack.c.h.b16 %v178
    %v796 = vunpack.c.l.b16 %v179
    %v797 = vunpack.c.h.b16 %v179
    %v798 = vunpack.c.l.b16 %v180
    %v799 = vunpack.c.h.b16 %v180
    %v800 = vunpack.c.l.b16 %v181
    %v801 = vunpack.c.h.b16 %v181
    %v802 = vunpack.c.l.b16 %v182
    %v803 = vunpack.c.h.b16 %v182
    %v804 = vunpack.c.l.b16 %v183
    %v805 = vunpack.c.h.b16 %v183
    %v806 = vunpack.c.l.b16 %v184
    %v807 = vunpack.c.h.b16 %v184
    %v808 = vunpack.c.l.b16 %v185
    %v809 = vunpack.c.h.b16 %v185
    %v810 = vunpack.c.l.b16 %v186
    %v811 = vunpack.c.h.b16 %v186
    %v812 = vunpack.c.l.b16 %v187
    %v813 = vunpack.c.h.b16 %v187
    %v814 = vunpack.c.l.b16 %v188
    %v815 = vunpack.c.h.b16 %v188
    %v816 = vunpack.c.l.b16 %v189
    %v817 = vunpack.c.h.b16 %v189
    %v818 = vunpack.c.l.b16 %v190
    %v819 = vunpack.c.h.b16 %v190
    %v820 = vunpack.c.l.b16 %v191
    %v821 = vunpack.c.h.b16 %v191
    %v822 = vunpack.c.l.b16 %v192
    %v823 = vunpack.c.h.b16 %v192
    %v824 = vunpack.c.l.b16 %v193
    %v825 = vunpack.c.h.b16 %v193
    %v826 = vunpack.c.l.b16 %v194
    %v827 = vunpack.c.h.b16 %v194
    %v828 = vunpack.c.l.b16 %v195
    %v829 = vunpack.c.h.b16 %v195
    %v830 = vunpack.c.l.b16 %v196
    %v831 = vunpack.c.h.b16 %v196
    %v832 = vunpack.c.l.b16 %v197
    %v833 = vunpack.c.h.b16 %v197
    %v834 = vunpack.c.l.b16 %v198
    %v835 = vunpack.c.h.b16 %v198
    %v836 = vunpack.c.l.b16 %v199
    %v837 = vunpack.c.h.b16 %v199
    %v838 = vunpack.c.l.b16 %v200
    %v839 = vunpack.c.h.b16 %v200
    %v840 = vunpack.c.l.b16 %v201
    %v841 = vunpack.c.h.b16 %v201
    %v842 = vunpack.c.l.b16 %v202
    %v843 = vunpack.c.h.b16 %v202
    %v844 = vunpack.c.l.b16 %v203
    %v845 = vunpack.c.h.b16 %v203
    %v846 = vunpack.c.l.b16 %v204
    %v847 = vunpack.c.h.b16 %v204
    %v848 = vunpack.c.l.b16 %v205
    %v849 = vunpack.c.h.b16 %v205
    %v850 = vunpack.c.l.b16 %v206
    %v851 = vunpack.c.h.b16 %v206
    %v852 = vunpack.c.l.b16 %v207
    %v853 = vunpack.c.h.b16 %v207
    %v854 = vunpack.c.l.b16 %v208
    %v855 = vunpack.c.h.b16 %v208
    %v856 = vunpack.c.l.b16 %v209
    %v857 = vunpack.c.h.b16 %v209
    %v858 = vunpack.c.l.b16 %v210
    %v859 = vunpack.c.h.b16 %v210
    %v860 = vunpack.c.l.b16 %v211
    %v861 = vunpack.c.h.b16 %v211
    %v862 = vunpack.c.l.b16 %v212
    %v863 = vunpack.c.h.b16 %v212
    %v864 = vunpack.c.l.b16 %v213
    %v865 = vunpack.c.h.b16 %v213
    %v866 = vunpack.c.l.b16 %v214
    %v867 = vunpack.c.h.b16 %v214
    %v868 = vunpack.c.l.b16 %v215
    %v869 = vunpack.c.h.b16 %v215
    %v870 = vunpack.c.l.b16 %v216
    %v871 = vunpack.c.h.b16 %v216
    %v872 = vunpack.c.l.b16 %v217
    %v873 = vunpack.c.h.b16 %v217
    %v874 = vunpack.c.l.b16 %v218
    %v875 = vunpack.c.h.b16 %v218
    %v876 = vunpack.c.l.b16 %v219
    %v877 = vunpack.c.h.b16 %v219
    %v878 = vunpack.c.l.b16 %v220
    %v879 = vunpack.c.h.b16 %v220
    %v880 = vunpack.c.l.b16 %v221
    %v881 = vunpack.c.h.b16 %v221
    %v882 = vunpack.c.l.b16 %v222
    %v883 = vunpack.c.h.b16 %v222
    %v884 = vunpack.c.l.b16 %v223
    %v885 = vunpack.c.h.b16 %v223
    %v886 = vunpack.c.l.b16 %v224
    %v887 = vunpack.c.h.b16 %v224
    %v888 = vunpack.c.l.b16 %v225
    %v889 = vunpack.c.h.b16 %v225
    %v890 = vunpack.c.l.b16 %v226
    %v891 = vunpack.c.h.b16 %v226
    %v892 = vunpack.c.l.b16 %v227
    %v893 = vunpack.c.h.b16 %v227
    %v894 = vunpack.c.l.b16 %v228
    %v895 = vunpack.c.h.b16 %v228
    %v896 = vunpack.c.l.b16 %v229
    %v897 = vunpack.c.h.b16 %v229
    %v898 = vunpack.c.l.b16 %v230
    %v899 = vunpack.c.h.b16 %v230
    %v900 = vunpack.c.l.b16 %v231
    %v901 = vunpack.c.h.b16 %v231
    %v902 = vunpack.c.l.b16 %v232
    %v903 = vunpack.c.h.b16 %v232
    %v904 = vunpack.c.l.b16 %v233
    %v905 = vunpack.c.h.b16 %v233
    %v906 = vunpack.c.l.b16 %v234
    %v907 = vunpack.c.h.b16 %v234
    %v908 = vunpack.c.l.b16 %v235
    %v909 = vunpack.c.h.b16 %v235
    %v910 = vunpack.c.l.b16 %v236
    %v911 = vunpack.c.h.b16 %v236
    %v912 = vunpack.c.l.b16 %v237
    %v913 = vunpack.c.h.b16 %v237
    %v914 = vunpack.c.l.b16 %v238
    %v915 = vunpack.c.h.b16 %v238
    %v916 = vunpack.c.l.b16 %v239
    %v917 = vunpack.c.h.b16 %v239
    %v918 = vunpack.c.l.b16 %v240
    %v919 = vunpack.c.h.b16 %v240
    %v920 = vunpack.c.l.b16 %v241
    %v921 = vunpack.c.h.b16 %v241
    %v922 = vunpack.c.l.b16 %v242
    %v923 = vunpack.c.h.b16 %v242
    %v924 = vunpack.c.l.b16 %v243
    %v925 = vunpack.c.h.b16 %v243
    %v926 = vunpack.c.l.b16 %v244
    %v927 = vunpack.c.h.b16 %v244
    %v928 = vunpack.c.l.b16 %v245
    %v929 = vunpack.c.h.b16 %v245
    %v930 = vunpack.c.l.b16 %v246
    %v931 = vunpack.c.h.b16 %v246
    %v932 = vunpack.c.l.b16 %v247
    %v933 = vunpack.c.h.b16 %v247
    %v934 = vunpack.c.l.b16 %v248
    %v935 = vunpack.c.h.b16 %v248
    %v936 = vunpack.c.l.b16 %v249
    %v937 = vunpack.c.h.b16 %v249
    %v938 = vunpack.c.l.b16 %v250
    %v939 = vunpack.c.h.b16 %v250
    %v940 = vunpack.c.l.b16 %v251
    %v941 = vunpack.c.h.b16 %v251
    %v942 = vunpack.c.l.b16 %v252
    %v943 = vunpack.c.h.b16 %v252
    %v944 = vunpack.c.l.b16 %v253
    %v945 = vunpack.c.h.b16 %v253
    %v946 = vunpack.c.l.b16 %v254
    %v947 = vunpack.c.h.b16 %v254
    %v948 = vunpack.c.l.b16 %v255
    %v949 = vunpack.c.h.b16 %v255
    %v950 = vunpack.c.l.b16 %v256
    %v951 = vunpack.c.h.b16 %v256
    %v952 = vunpack.c.l.b16 %v257
    %v953 = vunpack.c.h.b16 %v257
    %v954 = vunpack.c.l.b16 %v258
    %v955 = vunpack.c.h.b16 %v258
    %v956 = vunpack.c.l.b16 %v259
    %v957 = vunpack.c.h.b16 %v259
    %v958 = vunpack.c.l.b16 %v260
    %v959 = vunpack.c.h.b16 %v260
    %v960 = vunpack.c.l.b16 %v261
    %v961 = vunpack.c.h.b16 %v261
    %v962 = vunpack.c.l.b16 %v262
    %v963 = vunpack.c.h.b16 %v262
    %v964 = vunpack.c.l.b16 %v263
    %v965 = vunpack.c.h.b16 %v263
    %v966 = vunpack.c.l.b16 %v264
    %v967 = vunpack.c.h.b16 %v264
    %v968 = vunpack.c.l.b16 %v265
    %v969 = vunpack.c.h.b16 %v265
    %v970 = vunpack.c.l.b16 %v266
    %v971 = vunpack.c.h.b16 %v266
    %v972 = vunpack.c.l.b16 %v267
    %v973 = vunpack.c.h.b16 %v267
    %v974 = vunpack.c.l.b16 %v268
    %v975 = vunpack.c.h.b16 %v268
    %v976 = vunpack.c.l.b16 %v269
    %v977 = vunpack.c.h.b16 %v269
    %v978 = vunpack.c.l.b16 %v270
    %v979 = vunpack.c.h.b16 %v270
    %v980 = vunpack.c.l.b16 %v271
    %v981 = vunpack.c.h.b16 %v271
    %v982 = vunpack.c.l.b16 %v272
    %v983 = vunpack.c.h.b16 %v272
    %v984 = vunpack.c.l.b16 %v273
    %v985 = vunpack.c.h.b16 %v273
    %v986 = vunpack.c.l.b16 %v274
    %v987 = vunpack.c.h.b16 %v274
    %v988 = vunpack.c.l.b16 %v275
    %v989 = vunpack.c.h.b16 %v275
    %v990 = vunpack.c.l.b16 %v276
    %v991 = vunpack.c.h.b16 %v276
    %v992 = vunpack.c.l.b16 %v277
    %v993 = vunpack.c.h.b16 %v277
    %v994 = vunpack.c.l.b16 %v278
    %v995 = vunpack.c.h.b16 %v278
    %v996 = vunpack.c.l.b16 %v279
    %v997 = vunpack.c.h.b16 %v279
    %v998 = vunpack.c.l.b16 %v280
    %v999 = vunpack.c.h.b16 %v280
    %v1000 = vunpack.c.l.b16 %v281
    %v1001 = vunpack.c.h.b16 %v281
    %v1002 = vunpack.c.l.b16 %v282
    %v1003 = vunpack.c.h.b16 %v282
    %v1004 = vunpack.c.l.b16 %v283
    %v1005 = vunpack.c.h.b16 %v283
    %v1006 = vunpack.c.l.b16 %v284
    %v1007 = vunpack.c.h.b16 %v284
    %v1008 = vunpack.c.l.b16 %v285
    %v1009 = vunpack.c.h.b16 %v285
    %v1010 = vunpack.c.l.b16 %v286
    %v1011 = vunpack.c.h.b16 %v286
    %v1012 = vunpack.c.l.b16 %v287
    %v1013 = vunpack.c.h.b16 %v287
    %v1014 = vunpack.c.l.b16 %v288
    %v1015 = vunpack.c.h.b16 %v288
    %v1016 = vunpack.c.l.b16 %v289
    %v1017 = vunpack.c.h.b16 %v289
    %v1018 = vunpack.c.l.b16 %v290
    %v1019 = vunpack.c.h.b16 %v290
    %v1020 = vunpack.c.l.b16 %v291
    %v1021 = vunpack.c.h.b16 %v291
    %v1022 = vunpack.c.l.b16 %v292
    %v1023 = vunpack.c.h.b16 %v292
    %v1024 = vunpack.c.l.b16 %v293
    %v1025 = vunpack.c.h.b16 %v293
    %v1026 = vunpack.c.l.b16 %v294
    %v1027 = vunpack.c.h.b16 %v294
    %v1028 = vunpack.c.l.b16 %v295
    %v1029 = vunpack.c.h.b16 %v295
    %v1030 = vunpack.c.l.b16 %v296
    %v1031 = vunpack.c.h.b16 %v296
    %v1032 = vunpack.c.l.b16 %v297
    %v1033 = vunpack.c.h.b16 %v297
    %v1034 = vunpack.c.l.b16 %v298
    %v1035 = vunpack.c.h.b16 %v298
    %v1036 = vunpack.c.l.b16 %v299
    %v1037 = vunpack.c.h.b16 %v299
    %v1038 = vunpack.c.l.b16 %v300
    %v1039 = vunpack.c.h.b16 %v300
    %v1040 = vunpack.c.l.b16 %v301
    %v1041 = vunpack.c.h.b16 %v301
    %v1042 = vunpack.c.l.b16 %v302
    %v1043 = vunpack.c.h.b16 %v302
    %v1044 = vunpack.c.l.b16 %v303
    %v1045 = vunpack.c.h.b16 %v303
    %v1046 = vunpack.c.l.b16 %v304
    %v1047 = vunpack.c.h.b16 %v304
    %v1048 = vunpack.c.l.b16 %v305
    %v1049 = vunpack.c.h.b16 %v305
    %v1050 = vunpack.c.l.b16 %v306
    %v1051 = vunpack.c.h.b16 %v306
    %v1052 = vunpack.c.l.b16 %v307
    %v1053 = vunpack.c.h.b16 %v307
    %v1054 = vunpack.c.l.b16 %v308
    %v1055 = vunpack.c.h.b16 %v308
    %v1056 = vunpack.c.l.b16 %v309
    %v1057 = vunpack.c.h.b16 %v309
    %v1058 = vunpack.c.l.b16 %v310
    %v1059 = vunpack.c.h.b16 %v310
    %v1060 = vunpack.c.l.b16 %v311
    %v1061 = vunpack.c.h.b16 %v311
    %v1062 = vunpack.c.l.b16 %v312
    %v1063 = vunpack.c.h.b16 %v312
    %v1064 = vunpack.c.l.b16 %v313
    %v1065 = vunpack.c.h.b16 %v313
    %v1066 = vunpack.c.l.b16 %v314
    %v1067 = vunpack.c.h.b16 %v314
    %v1068 = vunpack.c.l.b16 %v315
    %v1069 = vunpack.c.h.b16 %v315
    %v1070 = vunpack.c.l.b16 %v316
    %v1071 = vunpack.c.h.b16 %v316
    %v1072 = vunpack.c.l.b16 %v317
    %v1073 = vunpack.c.h.b16 %v317
    %v1074 = vunpack.c.l.b16 %v318
    %v1075 = vunpack.c.h.b16 %v318
    %v1076 = vunpack.c.l.b16 %v319
    %v1077 = vunpack.c.h.b16 %v319
    %v1078 = vunpack.c.l.b16 %v320
    %v1079 = vunpack.c.h.b16 %v320
    %v1080 = vunpack.c.l.b16 %v321
    %v1081 = vunpack.c.h.b16 %v321
    %v1082 = vunpack.c.l.b16 %v322
    %v1083 = vunpack.c.h.b16 %v322
    %v1084 = vunpack.c.l.b16 %v323
    %v1085 = vunpack.c.h.b16 %v323
    %v1086 = vunpack.c.l.b16 %v324
    %v1087 = vunpack.c.h.b16 %v324
    %v1088 = vunpack.c.l.b16 %v325
    %v1089 = vunpack.c.h.b16 %v325
    %v1090 = vunpack.c.l.b16 %v326
    %v1091 = vunpack.c.h.b16 %v326
    %v1092 = vunpack.c.l.b16 %v327
    %v1093 = vunpack.c.h.b16 %v327
    %v1094 = vunpack.c.l.b16 %v328
    %v1095 = vunpack.c.h.b16 %v328
    %v1096 = vunpack.c.l.b16 %v329
    %v1097 = vunpack.c.h.b16 %v329
    %v1098 = vunpack.c.l.b16 %v330
    %v1099 = vunpack.c.h.b16 %v330
    %v1100 = vunpack.c.l.b16 %v331
    %v1101 = vunpack.c.h.b16 %v331
    %v1102 = vunpack.c.l.b16 %v332
    %v1103 = vunpack.c.h.b16 %v332
    %v1104 = vunpack.c.l.b16 %v333
    %v1105 = vunpack.c.h.b16 %v333
    %v1106 = vunpack.c.l.b16 %v334
    %v1107 = vunpack.c.h.b16 %v334
    %v1108 = vunpack.c.l.b16 %v335
    %v1109 = vunpack.c.h.b16 %v335
    %v1110 = vunpack.c.l.b16 %v336
    %v1111 = vunpack.c.h.b16 %v336
    %v1112 = vunpack.c.l.b16 %v337
    %v1113 = vunpack.c.h.b16 %v337
    %v1114 = vunpack.c.l.b16 %v338
    %v1115 = vunpack.c.h.b16 %v338
    %v1116 = vunpack.c.l.b16 %v339
    %v1117 = vunpack.c.h.b16 %v339
    %v1118 = vunpack.c.l.b16 %v340
    %v1119 = vunpack.c.h.b16 %v340
    %v1120 = vunpack.c.l.b16 %v341
    %v1121 = vunpack.c.h.b16 %v341
    %v1122 = vunpack.c.l.b16 %v342
    %v1123 = vunpack.c.h.b16 %v342
    %v1124 = vunpack.c.l.b16 %v343
    %v1125 = vunpack.c.h.b16 %v343
    %v1126 = vunpack.c.l.b16 %v344
    %v1127 = vunpack.c.h.b16 %v344
    %v1128 = vunpack.c.l.b16 %v345
    %v1129 = vunpack.c.h.b16 %v345
    %v1130 = vunpack.c.l.b16 %v346
    %v1131 = vunpack.c.h.b16 %v346
    %v1132 = vunpack.c.l.b16 %v347
    %v1133 = vunpack.c.h.b16 %v347
    %v1134 = vunpack.c.l.b16 %v348
    %v1135 = vunpack.c.h.b16 %v348
    %v1136 = vunpack.c.l.b16 %v349
    %v1137 = vunpack.c.h.b16 %v349
    %v1138 = vunpack.c.l.b16 %v350
    %v1139 = vunpack.c.h.b16 %v350
    %v1140 = vunpack.c.l.b16 %v351
    %v1141 = vunpack.c.h.b16 %v351
    %v1142 = vunpack.c.l.b16 %v352
    %v1143 = vunpack.c.h.b16 %v352
    %v1144 = vunpack.c.l.b16 %v353
    %v1145 = vunpack.c.h.b16 %v353
    %v1146 = vunpack.c.l.b16 %v354
    %v1147 = vunpack.c.h.b16 %v354
    %v1148 = vunpack.c.l.b16 %v355
    %v1149 = vunpack.c.h.b16 %v355
    %v1150 = vunpack.c.l.b16 %v356
    %v1151 = vunpack.c.h.b16 %v356
    %v1152 = vunpack.c.l.b16 %v357
    %v1153 = vunpack.c.h.b16 %v357
    %v1154 = vpack.c.b16 %v646, %v642
    %v1155 = vpack.c.b16 %v647, %v643
    %v1156 = vpack.c.b16 %v648, %v644
    %v1157 = vpack.c.b16 %v649, %v645
    %v1158 = vpack.c.b16 %v654, %v650
    %v1159 = vpack.c.b16 %v655, %v651
    %v1160 = vpack.c.b16 %v656, %v652
    %v1161 = vpack.c.b16 %v657, %v653
    %v1162 = vpack.c.b16 %v662, %v658
    %v1163 = vpack.c.b16 %v663, %v659
    %v1164 = vpack.c.b16 %v664, %v660
    %v1165 = vpack.c.b16 %v665, %v661
    %v1166 = vpack.c.b16 %v670, %v666
    %v1167 = vpack.c.b16 %v671, %v667
    %v1168 = vpack.c.b16 %v672, %v668
    %v1169 = vpack.c.b16 %v673, %v669
    %v1170 = vpack.c.b16 %v678, %v674
    %v1171 = vpack.c.b16 %v679, %v675
    %v1172 = vpack.c.b16 %v680, %v676
    %v1173 = vpack.c.b16 %v681, %v677
    %v1174 = vpack.c.b16 %v686, %v682
    %v1175 = vpack.c.b16 %v687, %v683
    %v1176 = vpack.c.b16 %v688, %v684
    %v1177 = vpack.c.b16 %v689, %v685
    %v1178 = vpack.c.b16 %v694, %v690
    %v1179 = vpack.c.b16 %v695, %v691
    %v1180 = vpack.c.b16 %v696, %v692
    %v1181 = vpack.c.b16 %v697, %v693
    %v1182 = vpack.c.b16 %v702, %v698
    %v1183 = vpack.c.b16 %v703, %v699
    %v1184 = vpack.c.b16 %v704, %v700
    %v1185 = vpack.c.b16 %v705, %v701
    %v1186 = vpack.c.b16 %v710, %v706
    %v1187 = vpack.c.b16 %v711, %v707
    %v1188 = vpack.c.b16 %v712, %v708
    %v1189 = vpack.c.b16 %v713, %v709
    %v1190 = vpack.c.b16 %v718, %v714
    %v1191 = vpack.c.b16 %v719, %v715
    %v1192 = vpack.c.b16 %v720, %v716
    %v1193 = vpack.c.b16 %v721, %v717
    %v1194 = vpack.c.b16 %v726, %v722
    %v1195 = vpack.c.b16 %v727, %v723
    %v1196 = vpack.c.b16 %v728, %v724
    %v1197 = vpack.c.b16 %v729, %v725
    %v1198 = vpack.c.b16 %v734, %v730
    %v1199 = vpack.c.b16 %v735, %v731
    %v1200 = vpack.c.b16 %v736, %v732
    %v1201 = vpack.c.b16 %v737, %v733
    %v1202 = vpack.c.b16 %v742, %v738
    %v1203 = vpack.c.b16 %v743, %v739
    %v1204 = vpack.c.b16 %v744, %v740
    %v1205 = vpack.c.b16 %v745, %v741
    %v1206 = vpack.c.b16 %v750, %v746
    %v1207 = vpack.c.b16 %v751, %v747
    %v1208 = vpack.c.b16 %v752, %v748
    %v1209 = vpack.c.b16 %v753, %v749
    %v1210 = vpack.c.b16 %v758, %v754
    %v1211 = vpack.c.b16 %v759, %v755
    %v1212 = vpack.c.b16 %v760, %v756
    %v1213 = vpack.c.b16 %v761, %v757
    %v1214 = vpack.c.b16 %v766, %v762
    %v1215 = vpack.c.b16 %v767, %v763
    %v1216 = vpack.c.b16 %v768, %v764
    %v1217 = vpack.c.b16 %v769, %v765
    %v1218 = vpack.c.b16 %v774, %v770
    %v1219 = vpack.c.b16 %v775, %v771
    %v1220 = vpack.c.b16 %v776, %v772
    %v1221 = vpack.c.b16 %v777, %v773
    %v1222 = vpack.c.b16 %v782, %v778
    %v1223 = vpack.c.b16 %v783, %v779
    %v1224 = vpack.c.b16 %v784, %v780
    %v1225 = vpack.c.b16 %v785, %v781
    %v1226 = vpack.c.b16 %v790, %v786
    %v1227 = vpack.c.b16 %v791, %v787
    %v1228 = vpack.c.b16 %v792, %v788
    %v1229 = vpack.c.b16 %v793, %v789
    %v1230 = vpack.c.b16 %v798, %v794
    %v1231 = vpack.c.b16 %v799, %v795
    %v1232 = vpack.c.b16 %v800, %v796
    %v1233 = vpack.c.b16 %v801, %v797
    %v1234 = vpack.c.b16 %v806, %v802
    %v1235 = vpack.c.b16 %v807, %v803
    %v1236 = vpack.c.b16 %v808, %v804
    %v1237 = vpack.c.b16 %v809, %v805
    %v1238 = vpack.c.b16 %v814, %v810
    %v1239 = vpack.c.b16 %v815, %v811
    %v1240 = vpack.c.b16 %v816, %v812
    %v1241 = vpack.c.b16 %v817, %v813
    %v1242 = vpack.c.b16 %v822, %v818
    %v1243 = vpack.c.b16 %v823, %v819
    %v1244 = vpack.c.b16 %v824, %v820
    %v1245 = vpack.c.b16 %v825, %v821
    %v1246 = vpack.c.b16 %v830, %v826
    %v1247 = vpack.c.b16 %v831, %v827
    %v1248 = vpack.c.b16 %v832, %v828
    %v1249 = vpack.c.b16 %v833, %v829
    %v1250 = vpack.c.b16 %v838, %v834
    %v1251 = vpack.c.b16 %v839, %v835
    %v1252 = vpack.c.b16 %v840, %v836
    %v1253 = vpack.c.b16 %v841, %v837
    %v1254 = vpack.c.b16 %v846, %v842
    %v1255 = vpack.c.b16 %v847, %v843
    %v1256 = vpack.c.b16 %v848, %v844
    %v1257 = vpack.c.b16 %v849, %v845
    %v1258 = vpack.c.b16 %v854, %v850
    %v1259 = vpack.c.b16 %v855, %v851
    %v1260 = vpack.c.b16 %v856, %v852
    %v1261 = vpack.c.b16 %v857, %v853
    %v1262 = vpack.c.b16 %v862, %v858
    %v1263 = vpack.c.b16 %v863, %v859
    %v1264 = vpack.c.b16 %v864, %v860
    %v1265 = vpack.c.b16 %v865, %v861
    %v1266 = vpack.c.b16 %v870, %v866
    %v1267 = vpack.c.b16 %v871, %v867
    %v1268 = vpack.c.b16 %v872, %v868
    %v1269 = vpack.c.b16 %v873, %v869
    %v1270 = vpack.c.b16 %v878, %v874
    %v1271 = vpack.c.b16 %v879, %v875
    %v1272 = vpack.c.b16 %v880, %v876
    %v1273 = vpack.c.b16 %v881, %v877
    %v1274 = vpack.c.b16 %v886, %v882
    %v1275 = vpack.c.b16 %v887, %v883
    %v1276 = vpack.c.b16 %v888, %v884
    %v1277 = vpack.c.b16 %v889, %v885
    %v1278 = vpack.c.b16 %v894, %v890
    %v1279 = vpack.c.b16 %v895, %v891
    %v1280 = vpack.c.b16 %v896, %v892
    %v1281 = vpack.c.b16 %v897, %v893
    %v1282 = vpack.c.b16 %v902, %v898
    %v1283 = vpack.c.b16 %v903, %v899
    %v1284 = vpack.c.b16 %v904, %v900
    %v1285 = vpack.c.b16 %v905, %v901
    %v1286 = vpack.c.b16 %v910, %v906
    %v1287 = vpack.c.b16 %v911, %v907
    %v1288 = vpack.c.b16 %v912, %v908
    %v1289 = vpack.c.b16 %v913, %v909
    %v1290 = vpack.c.b16 %v918, %v914
    %v1291 = vpack.c.b16 %v919, %v915
    %v1292 = vpack.c.b16 %v920, %v916
    %v1293 = vpack.c.b16 %v921, %v917
    %v1294 = vpack.c.b16 %v926, %v922
    %v1295 = vpack.c.b16 %v927, %v923
    %v1296 = vpack.c.b16 %v928, %v924
    %v1297 = vpack.c.b16 %v929, %v925
    %v1298 = vpack.c.b16 %v934, %v930
    %v1299 = vpack.c.b16 %v935, %v931
    %v1300 = vpack.c.b16 %v936, %v932
    %v1301 = vpack.c.b16 %v937, %v933
    %v1302 = vpack.c.b16 %v942, %v938
    %v1303 = vpack.c.b16 %v943, %v939
    %v1304 = vpack.c.b16 %v944, %v940
    %v1305 = vpack.c.b16 %v945, %v941
    %v1306 = vpack.c.b16 %v950, %v946
    %v1307 = vpack.c.b16 %v951, %v947
    %v1308 = vpack.c.b16 %v952, %v948
    %v1309 = vpack.c.b16 %v953, %v949
    %v1310 = vpack.c.b16 %v958, %v954
    %v1311 = vpack.c.b16 %v959, %v955
    %v1312 = vpack.c.b16 %v960, %v956
    %v1313 = vpack.c.b16 %v961, %v957
    %v1314 = vpack.c.b16 %v966, %v962
    %v1315 = vpack.c.b16 %v967, %v963
    %v1316 = vpack.c.b16 %v968, %v964
    %v1317 = vpack.c.b16 %v969, %v965
    %v1318 = vpack.c.b16 %v974, %v970
    %v1319 = vpack.c.b16 %v975, %v971
    %v1320 = vpack.c.b16 %v976, %v972
    %v1321 = vpack.c.b16 %v977, %v973
    %v1322 = vpack.c.b16 %v982, %v978
    %v1323 = vpack.c.b16 %v983, %v979
    %v1324 = vpack.c.b16 %v984, %v980
    %v1325 = vpack.c.b16 %v985, %v981
    %v1326 = vpack.c.b16 %v990, %v986
    %v1327 = vpack.c.b16 %v991, %v987
    %v1328 = vpack.c.b16 %v992, %v988
    %v1329 = vpack.c.b16 %v993, %v989
    %v1330 = vpack.c.b16 %v998, %v994
    %v1331 = vpack.c.b16 %v999, %v995
    %v1332 = vpack.c.b16 %v1000, %v996
    %v1333 = vpack.c.b16 %v1001, %v997
    %v1334 = vpack.c.b16 %v1006, %v1002
    %v1335 = vpack.c.b16 %v1007, %v1003
    %v1336 = vpack.c.b16 %v1008, %v1004
    %v1337 = vpack.c.b16 %v1009, %v1005
    %v1338 = vpack.c.b16 %v1014, %v1010
    %v1339 = vpack.c.b16 %v1015, %v1011
    %v1340 = vpack.c.b16 %v1016, %v1012
    %v1341 = vpack.c.b16 %v1017, %v1013
    %v1342 = vpack.c.b16 %v1022, %v1018
    %v1343 = vpack.c.b16 %v1023, %v1019
    %v1344 = vpack.c.b16 %v1024, %v1020
    %v1345 = vpack.c.b16 %v1025, %v1021
    %v1346 = vpack.c.b16 %v1030, %v1026
    %v1347 = vpack.c.b16 %v1031, %v1027
    %v1348 = vpack.c.b16 %v1032, %v1028
    %v1349 = vpack.c.b16 %v1033, %v1029
    %v1350 = vpack.c.b16 %v1038, %v1034
    %v1351 = vpack.c.b16 %v1039, %v1035
    %v1352 = vpack.c.b16 %v1040, %v1036
    %v1353 = vpack.c.b16 %v1041, %v1037
    %v1354 = vpack.c.b16 %v1046, %v1042
    %v1355 = vpack.c.b16 %v1047, %v1043
    %v1356 = vpack.c.b16 %v1048, %v1044
    %v1357 = vpack.c.b16 %v1049, %v1045
    %v1358 = vpack.c.b16 %v1054, %v1050
    %v1359 = vpack.c.b16 %v1055, %v1051
    %v1360 = vpack.c.b16 %v1056, %v1052
    %v1361 = vpack.c.b16 %v1057, %v1053
    %v1362 = vpack.c.b16 %v1062, %v1058
    %v1363 = vpack.c.b16 %v1063, %v1059
    %v1364 = vpack.c.b16 %v1064, %v1060
    %v1365 = vpack.c.b16 %v1065, %v1061
    %v1366 = vpack.c.b16 %v1070, %v1066
    %v1367 = vpack.c.b16 %v1071, %v1067
    %v1368 = vpack.c.b16 %v1072, %v1068
    %v1369 = vpack.c.b16 %v1073, %v1069
    %v1370 = vpack.c.b16 %v1078, %v1074
    %v1371 = vpack.c.b16 %v1079, %v1075
    %v1372 = vpack.c.b16 %v1080, %v1076
    %v1373 = vpack.c.b16 %v1081, %v1077
    %v1374 = vpack.c.b16 %v1086, %v1082
    %v1375 = vpack.c.b16 %v1087, %v1083
    %v1376 = vpack.c.b16 %v1088, %v1084
    %v1377 = vpack.c.b16 %v1089, %v1085
    %v1378 = vpack.c.b16 %v1094, %v1090
    %v1379 = vpack.c.b16 %v1095, %v1091
    %v1380 = vpack.c.b16 %v1096, %v1092
    %v1381 = vpack.c.b16 %v1097, %v1093
    %v1382 = vpack.c.b16 %v1102, %v1098
    %v1383 = vpack.c.b16 %v1103, %v1099
    %v1384 = vpack.c.b16 %v1104, %v1100
    %v1385 = vpack.c.b16 %v1105, %v1101
    %v1386 = vpack.c.b16 %v1110, %v1106
    %v1387 = vpack.c.b16 %v1111, %v1107
    %v1388 = vpack.c.b16 %v1112, %v1108
    %v1389 = vpack.c.b16 %v1113, %v1109
    %v1390 = vpack.c.b16 %v1118, %v1114
    %v1391 = vpack.c.b16 %v1119, %v1115
    %v1392 = vpack.c.b16 %v1120, %v1116
    %v1393 = vpack.c.b16 %v1121, %v1117
    %v1394 = vpack.c.b16 %v1126, %v1122
    %v1395 = vpack.c.b16 %v1127, %v1123
    %v1396 = vpack.c.b16 %v1128, %v1124
    %v1397 = vpack.c.b16 %v1129, %v1125
    %v1398 = vpack.c.b16 %v1134, %v1130
    %v1399 = vpack.c.b16 %v1135, %v1131
    %v1400 = vpack.c.b16 %v1136, %v1132
    %v1401 = vpack.c.b16 %v1137, %v1133
    %v1402 = vpack.c.b16 %v1142, %v1138
    %v1403 = vpack.c.b16 %v1143, %v1139
    %v1404 = vpack.c.b16 %v1144, %v1140
    %v1405 = vpack.c.b16 %v1145, %v1141
    %v1406 = vpack.c.b16 %v1150, %v1146
    %v1407 = vpack.c.b16 %v1151, %v1147
    %v1408 = vpack.c.b16 %v1152, %v1148
    %v1409 = vpack.c.b16 %v1153, %v1149
    %1666 = vmatpush.bf16.msra.mxu0 %v1182
    %1667 = vmatpush.bf16.msra.mxu0 %v1178
    %1668 = vmatpush.bf16.msra.mxu0 %v1174
    %1669 = vmatpush.bf16.msra.mxu0 %v1170
    %1670 = vmatpush.bf16.msra.mxu0 %v1166
    %1671 = vmatpush.bf16.msra.mxu0 %v1162
    %1672 = vmatpush.bf16.msra.mxu0 %v1158
    %1673 = vmatpush.bf16.msra.mxu0 %v1154
    %1674 = vmatmul.bf16.gmra.mxu0 %v370
    %v1675 = vpop.f32.mrf.mxu0
    %v1676 = vadd.f32 %v360, %v1675
    %v1677 = vpop.f32.mrf.mxu0
    %1678 = vdwg.mxu0
    %1679 = vmatpush.bf16.msra.mxu0 %v1214
    %1680 = vmatpush.bf16.msra.mxu0 %v1210
    %1681 = vmatpush.bf16.msra.mxu0 %v1206
    %1682 = vmatpush.bf16.msra.mxu0 %v1202
    %1683 = vmatpush.bf16.msra.mxu0 %v1198
    %1684 = vmatpush.bf16.msra.mxu0 %v1194
    %1685 = vmatpush.bf16.msra.mxu0 %v1190
    %1686 = vmatpush.bf16.msra.mxu0 %v1186
    %1687 = vmatmul.bf16.gmra.mxu0 %v371
    %v1688 = vpop.f32.mrf.mxu0
    %v1689 = vadd.f32 %v1676, %v1688
    %v1690 = vpop.f32.mrf.mxu0
    %1691 = vdwg.mxu0
    %1692 = vmatpush.bf16.msra.mxu0 %v1246
    %1693 = vmatpush.bf16.msra.mxu0 %v1242
    %1694 = vmatpush.bf16.msra.mxu0 %v1238
    %1695 = vmatpush.bf16.msra.mxu0 %v1234
    %1696 = vmatpush.bf16.msra.mxu0 %v1230
    %1697 = vmatpush.bf16.msra.mxu0 %v1226
    %1698 = vmatpush.bf16.msra.mxu0 %v1222
    %1699 = vmatpush.bf16.msra.mxu0 %v1218
    %1700 = vmatmul.bf16.gmra.mxu0 %v372
    %v1701 = vpop.f32.mrf.mxu0
    %v1702 = vadd.f32 %v1689, %v1701
    %v1703 = vpop.f32.mrf.mxu0
    %1704 = vdwg.mxu0
    %1705 = vmatpush.bf16.msra.mxu0 %v1278
    %1706 = vmatpush.bf16.msra.mxu0 %v1274
    %1707 = vmatpush.bf16.msra.mxu0 %v1270
    %1708 = vmatpush.bf16.msra.mxu0 %v1266
    %1709 = vmatpush.bf16.msra.mxu0 %v1262
    %1710 = vmatpush.bf16.msra.mxu0 %v1258
    %1711 = vmatpush.bf16.msra.mxu0 %v1254
    %1712 = vmatpush.bf16.msra.mxu0 %v1250
    %1713 = vmatmul.bf16.gmra.mxu0 %v373
    %v1714 = vpop.f32.mrf.mxu0
    %v1715 = vadd.f32 %v1702, %v1714
    %v1716 = vpop.f32.mrf.mxu0
    %1717 = vdwg.mxu0
    %1718 = vmatpush.bf16.msra.mxu0 %v1310
    %1719 = vmatpush.bf16.msra.mxu0 %v1306
    %1720 = vmatpush.bf16.msra.mxu0 %v1302
    %1721 = vmatpush.bf16.msra.mxu0 %v1298
    %1722 = vmatpush.bf16.msra.mxu0 %v1294
    %1723 = vmatpush.bf16.msra.mxu0 %v1290
    %1724 = vmatpush.bf16.msra.mxu0 %v1286
    %1725 = vmatpush.bf16.msra.mxu0 %v1282
    %1726 = vmatmul.bf16.gmra.mxu0 %v374
    %v1727 = vpop.f32.mrf.mxu0
    %v1728 = vadd.f32 %v1715, %v1727
    %v1729 = vpop.f32.mrf.mxu0
    %1730 = vdwg.mxu0
    %1731 = vmatpush.bf16.msra.mxu0 %v1342
    %1732 = vmatpush.bf16.msra.mxu0 %v1338
    %1733 = vmatpush.bf16.msra.mxu0 %v1334
    %1734 = vmatpush.bf16.msra.mxu0 %v1330
    %1735 = vmatpush.bf16.msra.mxu0 %v1326
    %1736 = vmatpush.bf16.msra.mxu0 %v1322
    %1737 = vmatpush.bf16.msra.mxu0 %v1318
    %1738 = vmatpush.bf16.msra.mxu0 %v1314
    %1739 = vmatmul.bf16.gmra.mxu0 %v375
    %v1740 = vpop.f32.mrf.mxu0
    %v1741 = vadd.f32 %v1728, %v1740
    %v1742 = vpop.f32.mrf.mxu0
    %1743 = vdwg.mxu0
    %1744 = vmatpush.bf16.msra.mxu0 %v1374
    %1745 = vmatpush.bf16.msra.mxu0 %v1370
    %1746 = vmatpush.bf16.msra.mxu0 %v1366
    %1747 = vmatpush.bf16.msra.mxu0 %v1362
    %1748 = vmatpush.bf16.msra.mxu0 %v1358
    %1749 = vmatpush.bf16.msra.mxu0 %v1354
    %1750 = vmatpush.bf16.msra.mxu0 %v1350
    %1751 = vmatpush.bf16.msra.mxu0 %v1346
    %1752 = vmatmul.bf16.gmra.mxu0 %v376
    %v1753 = vpop.f32.mrf.mxu0
    %v1754 = vadd.f32 %v1741, %v1753
    %v1755 = vpop.f32.mrf.mxu0
    %1756 = vdwg.mxu0
    %1757 = vmatpush.bf16.msra.mxu0 %v1406
    %1758 = vmatpush.bf16.msra.mxu0 %v1402
    %1759 = vmatpush.bf16.msra.mxu0 %v1398
    %1760 = vmatpush.bf16.msra.mxu0 %v1394
    %1761 = vmatpush.bf16.msra.mxu0 %v1390
    %1762 = vmatpush.bf16.msra.mxu0 %v1386
    %1763 = vmatpush.bf16.msra.mxu0 %v1382
    %1764 = vmatpush.bf16.msra.mxu0 %v1378
    %1765 = vmatmul.bf16.gmra.mxu0 %v377
    %v1766 = vpop.f32.mrf.mxu0
    %v1767 = vadd.f32 %v1754, %v1766
    %v1768 = vpop.f32.mrf.mxu0
    %1769 = vdwg.mxu0
    %1770 = vmatpush.bf16.msra.mxu0 %v1183
    %1771 = vmatpush.bf16.msra.mxu0 %v1179
    %1772 = vmatpush.bf16.msra.mxu0 %v1175
    %1773 = vmatpush.bf16.msra.mxu0 %v1171
    %1774 = vmatpush.bf16.msra.mxu0 %v1167
    %1775 = vmatpush.bf16.msra.mxu0 %v1163
    %1776 = vmatpush.bf16.msra.mxu0 %v1159
    %1777 = vmatpush.bf16.msra.mxu0 %v1155
    %1778 = vmatmul.bf16.gmra.mxu0 %v370
    %v1779 = vpop.f32.mrf.mxu0
    %v1780 = vadd.f32 %v361, %v1779
    %v1781 = vpop.f32.mrf.mxu0
    %1782 = vdwg.mxu0
    %1783 = vmatpush.bf16.msra.mxu0 %v1215
    %1784 = vmatpush.bf16.msra.mxu0 %v1211
    %1785 = vmatpush.bf16.msra.mxu0 %v1207
    %1786 = vmatpush.bf16.msra.mxu0 %v1203
    %1787 = vmatpush.bf16.msra.mxu0 %v1199
    %1788 = vmatpush.bf16.msra.mxu0 %v1195
    %1789 = vmatpush.bf16.msra.mxu0 %v1191
    %1790 = vmatpush.bf16.msra.mxu0 %v1187
    %1791 = vmatmul.bf16.gmra.mxu0 %v371
    %v1792 = vpop.f32.mrf.mxu0
    %v1793 = vadd.f32 %v1780, %v1792
    %v1794 = vpop.f32.mrf.mxu0
    %1795 = vdwg.mxu0
    %1796 = vmatpush.bf16.msra.mxu0 %v1247
    %1797 = vmatpush.bf16.msra.mxu0 %v1243
    %1798 = vmatpush.bf16.msra.mxu0 %v1239
    %1799 = vmatpush.bf16.msra.mxu0 %v1235
    %1800 = vmatpush.bf16.msra.mxu0 %v1231
    %1801 = vmatpush.bf16.msra.mxu0 %v1227
    %1802 = vmatpush.bf16.msra.mxu0 %v1223
    %1803 = vmatpush.bf16.msra.mxu0 %v1219
    %1804 = vmatmul.bf16.gmra.mxu0 %v372
    %v1805 = vpop.f32.mrf.mxu0
    %v1806 = vadd.f32 %v1793, %v1805
    %v1807 = vpop.f32.mrf.mxu0
    %1808 = vdwg.mxu0
    %1809 = vmatpush.bf16.msra.mxu0 %v1279
    %1810 = vmatpush.bf16.msra.mxu0 %v1275
    %1811 = vmatpush.bf16.msra.mxu0 %v1271
    %1812 = vmatpush.bf16.msra.mxu0 %v1267
    %1813 = vmatpush.bf16.msra.mxu0 %v1263
    %1814 = vmatpush.bf16.msra.mxu0 %v1259
    %1815 = vmatpush.bf16.msra.mxu0 %v1255
    %1816 = vmatpush.bf16.msra.mxu0 %v1251
    %1817 = vmatmul.bf16.gmra.mxu0 %v373
    %v1818 = vpop.f32.mrf.mxu0
    %v1819 = vadd.f32 %v1806, %v1818
    %v1820 = vpop.f32.mrf.mxu0
    %1821 = vdwg.mxu0
    %1822 = vmatpush.bf16.msra.mxu0 %v1311
    %1823 = vmatpush.bf16.msra.mxu0 %v1307
    %1824 = vmatpush.bf16.msra.mxu0 %v1303
    %1825 = vmatpush.bf16.msra.mxu0 %v1299
    %1826 = vmatpush.bf16.msra.mxu0 %v1295
    %1827 = vmatpush.bf16.msra.mxu0 %v1291
    %1828 = vmatpush.bf16.msra.mxu0 %v1287
    %1829 = vmatpush.bf16.msra.mxu0 %v1283
    %1830 = vmatmul.bf16.gmra.mxu0 %v374
    %v1831 = vpop.f32.mrf.mxu0
    %v1832 = vadd.f32 %v1819, %v1831
    %v1833 = vpop.f32.mrf.mxu0
    %1834 = vdwg.mxu0
    %1835 = vmatpush.bf16.msra.mxu0 %v1343
    %1836 = vmatpush.bf16.msra.mxu0 %v1339
    %1837 = vmatpush.bf16.msra.mxu0 %v1335
    %1838 = vmatpush.bf16.msra.mxu0 %v1331
    %1839 = vmatpush.bf16.msra.mxu0 %v1327
    %1840 = vmatpush.bf16.msra.mxu0 %v1323
    %1841 = vmatpush.bf16.msra.mxu0 %v1319
    %1842 = vmatpush.bf16.msra.mxu0 %v1315
    %1843 = vmatmul.bf16.gmra.mxu0 %v375
    %v1844 = vpop.f32.mrf.mxu0
    %v1845 = vadd.f32 %v1832, %v1844
    %v1846 = vpop.f32.mrf.mxu0
    %1847 = vdwg.mxu0
    %1848 = vmatpush.bf16.msra.mxu0 %v1375
    %1849 = vmatpush.bf16.msra.mxu0 %v1371
    %1850 = vmatpush.bf16.msra.mxu0 %v1367
    %1851 = vmatpush.bf16.msra.mxu0 %v1363
    %1852 = vmatpush.bf16.msra.mxu0 %v1359
    %1853 = vmatpush.bf16.msra.mxu0 %v1355
    %1854 = vmatpush.bf16.msra.mxu0 %v1351
    %1855 = vmatpush.bf16.msra.mxu0 %v1347
    %1856 = vmatmul.bf16.gmra.mxu0 %v376
    %v1857 = vpop.f32.mrf.mxu0
    %v1858 = vadd.f32 %v1845, %v1857
    %v1859 = vpop.f32.mrf.mxu0
    %1860 = vdwg.mxu0
    %1861 = vmatpush.bf16.msra.mxu0 %v1407
    %1862 = vmatpush.bf16.msra.mxu0 %v1403
    %1863 = vmatpush.bf16.msra.mxu0 %v1399
    %1864 = vmatpush.bf16.msra.mxu0 %v1395
    %1865 = vmatpush.bf16.msra.mxu0 %v1391
    %1866 = vmatpush.bf16.msra.mxu0 %v1387
    %1867 = vmatpush.bf16.msra.mxu0 %v1383
    %1868 = vmatpush.bf16.msra.mxu0 %v1379
    %1869 = vmatmul.bf16.gmra.mxu0 %v377
    %v1870 = vpop.f32.mrf.mxu0
    %v1871 = vadd.f32 %v1858, %v1870
    %v1872 = vpop.f32.mrf.mxu0
    %1873 = vdwg.mxu0
    %1874 = vmatpush.bf16.msra.mxu0 %v1184
    %1875 = vmatpush.bf16.msra.mxu0 %v1180
    %1876 = vmatpush.bf16.msra.mxu0 %v1176
    %1877 = vmatpush.bf16.msra.mxu0 %v1172
    %1878 = vmatpush.bf16.msra.mxu0 %v1168
    %1879 = vmatpush.bf16.msra.mxu0 %v1164
    %1880 = vmatpush.bf16.msra.mxu0 %v1160
    %1881 = vmatpush.bf16.msra.mxu0 %v1156
    %1882 = vmatmul.bf16.gmra.mxu0 %v370
    %v1883 = vpop.f32.mrf.mxu0
    %v1884 = vadd.f32 %v362, %v1883
    %v1885 = vpop.f32.mrf.mxu0
    %1886 = vdwg.mxu0
    %1887 = vmatpush.bf16.msra.mxu0 %v1216
    %1888 = vmatpush.bf16.msra.mxu0 %v1212
    %1889 = vmatpush.bf16.msra.mxu0 %v1208
    %1890 = vmatpush.bf16.msra.mxu0 %v1204
    %1891 = vmatpush.bf16.msra.mxu0 %v1200
    %1892 = vmatpush.bf16.msra.mxu0 %v1196
    %1893 = vmatpush.bf16.msra.mxu0 %v1192
    %1894 = vmatpush.bf16.msra.mxu0 %v1188
    %1895 = vmatmul.bf16.gmra.mxu0 %v371
    %v1896 = vpop.f32.mrf.mxu0
    %v1897 = vadd.f32 %v1884, %v1896
    %v1898 = vpop.f32.mrf.mxu0
    %1899 = vdwg.mxu0
    %1900 = vmatpush.bf16.msra.mxu0 %v1248
    %1901 = vmatpush.bf16.msra.mxu0 %v1244
    %1902 = vmatpush.bf16.msra.mxu0 %v1240
    %1903 = vmatpush.bf16.msra.mxu0 %v1236
    %1904 = vmatpush.bf16.msra.mxu0 %v1232
    %1905 = vmatpush.bf16.msra.mxu0 %v1228
    %1906 = vmatpush.bf16.msra.mxu0 %v1224
    %1907 = vmatpush.bf16.msra.mxu0 %v1220
    %1908 = vmatmul.bf16.gmra.mxu0 %v372
    %v1909 = vpop.f32.mrf.mxu0
    %v1910 = vadd.f32 %v1897, %v1909
    %v1911 = vpop.f32.mrf.mxu0
    %1912 = vdwg.mxu0
    %1913 = vmatpush.bf16.msra.mxu0 %v1280
    %1914 = vmatpush.bf16.msra.mxu0 %v1276
    %1915 = vmatpush.bf16.msra.mxu0 %v1272
    %1916 = vmatpush.bf16.msra.mxu0 %v1268
    %1917 = vmatpush.bf16.msra.mxu0 %v1264
    %1918 = vmatpush.bf16.msra.mxu0 %v1260
    %1919 = vmatpush.bf16.msra.mxu0 %v1256
    %1920 = vmatpush.bf16.msra.mxu0 %v1252
    %1921 = vmatmul.bf16.gmra.mxu0 %v373
    %v1922 = vpop.f32.mrf.mxu0
    %v1923 = vadd.f32 %v1910, %v1922
    %v1924 = vpop.f32.mrf.mxu0
    %1925 = vdwg.mxu0
    %1926 = vmatpush.bf16.msra.mxu0 %v1312
    %1927 = vmatpush.bf16.msra.mxu0 %v1308
    %1928 = vmatpush.bf16.msra.mxu0 %v1304
    %1929 = vmatpush.bf16.msra.mxu0 %v1300
    %1930 = vmatpush.bf16.msra.mxu0 %v1296
    %1931 = vmatpush.bf16.msra.mxu0 %v1292
    %1932 = vmatpush.bf16.msra.mxu0 %v1288
    %1933 = vmatpush.bf16.msra.mxu0 %v1284
    %1934 = vmatmul.bf16.gmra.mxu0 %v374
    %v1935 = vpop.f32.mrf.mxu0
    %v1936 = vadd.f32 %v1923, %v1935
    %v1937 = vpop.f32.mrf.mxu0
    %1938 = vdwg.mxu0
    %1939 = vmatpush.bf16.msra.mxu0 %v1344
    %1940 = vmatpush.bf16.msra.mxu0 %v1340
    %1941 = vmatpush.bf16.msra.mxu0 %v1336
    %1942 = vmatpush.bf16.msra.mxu0 %v1332
    %1943 = vmatpush.bf16.msra.mxu0 %v1328
    %1944 = vmatpush.bf16.msra.mxu0 %v1324
    %1945 = vmatpush.bf16.msra.mxu0 %v1320
    %1946 = vmatpush.bf16.msra.mxu0 %v1316
    %1947 = vmatmul.bf16.gmra.mxu0 %v375
    %v1948 = vpop.f32.mrf.mxu0
    %v1949 = vadd.f32 %v1936, %v1948
    %v1950 = vpop.f32.mrf.mxu0
    %1951 = vdwg.mxu0
    %1952 = vmatpush.bf16.msra.mxu0 %v1376
    %1953 = vmatpush.bf16.msra.mxu0 %v1372
    %1954 = vmatpush.bf16.msra.mxu0 %v1368
    %1955 = vmatpush.bf16.msra.mxu0 %v1364
    %1956 = vmatpush.bf16.msra.mxu0 %v1360
    %1957 = vmatpush.bf16.msra.mxu0 %v1356
    %1958 = vmatpush.bf16.msra.mxu0 %v1352
    %1959 = vmatpush.bf16.msra.mxu0 %v1348
    %1960 = vmatmul.bf16.gmra.mxu0 %v376
    %v1961 = vpop.f32.mrf.mxu0
    %v1962 = vadd.f32 %v1949, %v1961
    %v1963 = vpop.f32.mrf.mxu0
    %1964 = vdwg.mxu0
    %1965 = vmatpush.bf16.msra.mxu0 %v1408
    %1966 = vmatpush.bf16.msra.mxu0 %v1404
    %1967 = vmatpush.bf16.msra.mxu0 %v1400
    %1968 = vmatpush.bf16.msra.mxu0 %v1396
    %1969 = vmatpush.bf16.msra.mxu0 %v1392
    %1970 = vmatpush.bf16.msra.mxu0 %v1388
    %1971 = vmatpush.bf16.msra.mxu0 %v1384
    %1972 = vmatpush.bf16.msra.mxu0 %v1380
    %1973 = vmatmul.bf16.gmra.mxu0 %v377
    %v1974 = vpop.f32.mrf.mxu0
    %v1975 = vadd.f32 %v1962, %v1974
    %v1976 = vpop.f32.mrf.mxu0
    %1977 = vdwg.mxu0
    %1978 = vmatpush.bf16.msra.mxu0 %v1185
    %1979 = vmatpush.bf16.msra.mxu0 %v1181
    %1980 = vmatpush.bf16.msra.mxu0 %v1177
    %1981 = vmatpush.bf16.msra.mxu0 %v1173
    %1982 = vmatpush.bf16.msra.mxu0 %v1169
    %1983 = vmatpush.bf16.msra.mxu0 %v1165
    %1984 = vmatpush.bf16.msra.mxu0 %v1161
    %1985 = vmatpush.bf16.msra.mxu0 %v1157
    %1986 = vmatmul.bf16.gmra.mxu0 %v370
    %v1987 = vpop.f32.mrf.mxu0
    %v1988 = vadd.f32 %v363, %v1987
    %v1989 = vpop.f32.mrf.mxu0
    %1990 = vdwg.mxu0
    %1991 = vmatpush.bf16.msra.mxu0 %v1217
    %1992 = vmatpush.bf16.msra.mxu0 %v1213
    %1993 = vmatpush.bf16.msra.mxu0 %v1209
    %1994 = vmatpush.bf16.msra.mxu0 %v1205
    %1995 = vmatpush.bf16.msra.mxu0 %v1201
    %1996 = vmatpush.bf16.msra.mxu0 %v1197
    %1997 = vmatpush.bf16.msra.mxu0 %v1193
    %1998 = vmatpush.bf16.msra.mxu0 %v1189
    %1999 = vmatmul.bf16.gmra.mxu0 %v371
    %v2000 = vpop.f32.mrf.mxu0
    %v2001 = vadd.f32 %v1988, %v2000
    %v2002 = vpop.f32.mrf.mxu0
    %2003 = vdwg.mxu0
    %2004 = vmatpush.bf16.msra.mxu0 %v1249
    %2005 = vmatpush.bf16.msra.mxu0 %v1245
    %2006 = vmatpush.bf16.msra.mxu0 %v1241
    %2007 = vmatpush.bf16.msra.mxu0 %v1237
    %2008 = vmatpush.bf16.msra.mxu0 %v1233
    %2009 = vmatpush.bf16.msra.mxu0 %v1229
    %2010 = vmatpush.bf16.msra.mxu0 %v1225
    %2011 = vmatpush.bf16.msra.mxu0 %v1221
    %2012 = vmatmul.bf16.gmra.mxu0 %v372
    %v2013 = vpop.f32.mrf.mxu0
    %v2014 = vadd.f32 %v2001, %v2013
    %v2015 = vpop.f32.mrf.mxu0
    %2016 = vdwg.mxu0
    %2017 = vmatpush.bf16.msra.mxu0 %v1281
    %2018 = vmatpush.bf16.msra.mxu0 %v1277
    %2019 = vmatpush.bf16.msra.mxu0 %v1273
    %2020 = vmatpush.bf16.msra.mxu0 %v1269
    %2021 = vmatpush.bf16.msra.mxu0 %v1265
    %2022 = vmatpush.bf16.msra.mxu0 %v1261
    %2023 = vmatpush.bf16.msra.mxu0 %v1257
    %2024 = vmatpush.bf16.msra.mxu0 %v1253
    %2025 = vmatmul.bf16.gmra.mxu0 %v373
    %v2026 = vpop.f32.mrf.mxu0
    %v2027 = vadd.f32 %v2014, %v2026
    %v2028 = vpop.f32.mrf.mxu0
    %2029 = vdwg.mxu0
    %2030 = vmatpush.bf16.msra.mxu0 %v1313
    %2031 = vmatpush.bf16.msra.mxu0 %v1309
    %2032 = vmatpush.bf16.msra.mxu0 %v1305
    %2033 = vmatpush.bf16.msra.mxu0 %v1301
    %2034 = vmatpush.bf16.msra.mxu0 %v1297
    %2035 = vmatpush.bf16.msra.mxu0 %v1293
    %2036 = vmatpush.bf16.msra.mxu0 %v1289
    %2037 = vmatpush.bf16.msra.mxu0 %v1285
    %2038 = vmatmul.bf16.gmra.mxu0 %v374
    %v2039 = vpop.f32.mrf.mxu0
    %v2040 = vadd.f32 %v2027, %v2039
    %v2041 = vpop.f32.mrf.mxu0
    %2042 = vdwg.mxu0
    %2043 = vmatpush.bf16.msra.mxu0 %v1345
    %2044 = vmatpush.bf16.msra.mxu0 %v1341
    %2045 = vmatpush.bf16.msra.mxu0 %v1337
    %2046 = vmatpush.bf16.msra.mxu0 %v1333
    %2047 = vmatpush.bf16.msra.mxu0 %v1329
    %2048 = vmatpush.bf16.msra.mxu0 %v1325
    %2049 = vmatpush.bf16.msra.mxu0 %v1321
    %2050 = vmatpush.bf16.msra.mxu0 %v1317
    %2051 = vmatmul.bf16.gmra.mxu0 %v375
    %v2052 = vpop.f32.mrf.mxu0
    %v2053 = vadd.f32 %v2040, %v2052
    %v2054 = vpop.f32.mrf.mxu0
    %2055 = vdwg.mxu0
    %2056 = vmatpush.bf16.msra.mxu0 %v1377
    %2057 = vmatpush.bf16.msra.mxu0 %v1373
    %2058 = vmatpush.bf16.msra.mxu0 %v1369
    %2059 = vmatpush.bf16.msra.mxu0 %v1365
    %2060 = vmatpush.bf16.msra.mxu0 %v1361
    %2061 = vmatpush.bf16.msra.mxu0 %v1357
    %2062 = vmatpush.bf16.msra.mxu0 %v1353
    %2063 = vmatpush.bf16.msra.mxu0 %v1349
    %2064 = vmatmul.bf16.gmra.mxu0 %v376
    %v2065 = vpop.f32.mrf.mxu0
    %v2066 = vadd.f32 %v2053, %v2065
    %v2067 = vpop.f32.mrf.mxu0
    %2068 = vdwg.mxu0
    %2069 = vmatpush.bf16.msra.mxu0 %v1409
    %2070 = vmatpush.bf16.msra.mxu0 %v1405
    %2071 = vmatpush.bf16.msra.mxu0 %v1401
    %2072 = vmatpush.bf16.msra.mxu0 %v1397
    %2073 = vmatpush.bf16.msra.mxu0 %v1393
    %2074 = vmatpush.bf16.msra.mxu0 %v1389
    %2075 = vmatpush.bf16.msra.mxu0 %v1385
    %2076 = vmatpush.bf16.msra.mxu0 %v1381
    %2077 = vmatmul.bf16.gmra.mxu0 %v377
    %v2078 = vpop.f32.mrf.mxu0
    %v2079 = vadd.f32 %v2066, %v2078
    %v2080 = vpop.f32.mrf.mxu0
    %2081 = vdwg.mxu0
    %v2082 = vmax.f32 %v1767, 0.0
    %v2083 = vmax.f32 %v1871, 0.0
    %v2084 = vmax.f32 %v1975, 0.0
    %v2085 = vmax.f32 %v2079, 0.0
    %v2086 = vpack.c.bf16 %v2082, %v2082
    %v2087 = vpack.c.bf16 %v2083, %v2083
    %v2088 = vpack.c.bf16 %v2084, %v2084
    %v2089 = vpack.c.bf16 %v2085, %v2085
    %v2090 = vld [vmem:[#allocation8] sm:$0xf]
    %v2091 = vld [vmem:[#allocation8 + $0x4] sm:$0xf]
    %v2092 = vld [vmem:[#allocation8 + $0x8] sm:$0xf]
    %v2093 = vld [vmem:[#allocation8 + $0xc] sm:$0xf]
    %v2094 = vld [vmem:[#allocation8 + $0x10] sm:$0xf]
    %v2095 = vld [vmem:[#allocation8 + $0x14] sm:$0xf]
    %v2096 = vld [vmem:[#allocation8 + $0x18] sm:$0xf]
    %v2097 = vld [vmem:[#allocation8 + $0x1c] sm:$0xf]
    %v2098 = vld [vmem:[#allocation8 + $0x20] sm:$0xf]
    %v2099 = vld [vmem:[#allocation8 + $0x24] sm:$0xf]
    %v2100 = vld [vmem:[#allocation8 + $0x28] sm:$0xf]
    %v2101 = vld [vmem:[#allocation8 + $0x2c] sm:$0xf]
    %v2102 = vld [vmem:[#allocation8 + $0x30] sm:$0xf]
    %v2103 = vld [vmem:[#allocation8 + $0x34] sm:$0xf]
    %v2104 = vld [vmem:[#allocation8 + $0x38] sm:$0xf]
    %v2105 = vld [vmem:[#allocation8 + $0x3c] sm:$0xf]
    %v2106 = vld [vmem:[#allocation8 + $0x40] sm:$0xf]
    %v2107 = vld [vmem:[#allocation8 + $0x44] sm:$0xf]
    %v2108 = vld [vmem:[#allocation8 + $0x48] sm:$0xf]
    %v2109 = vld [vmem:[#allocation8 + $0x4c] sm:$0xf]
    %v2110 = vld [vmem:[#allocation8 + $0x50] sm:$0xf]
    %v2111 = vld [vmem:[#allocation8 + $0x54] sm:$0xf]
    %v2112 = vld [vmem:[#allocation8 + $0x58] sm:$0xf]
    %v2113 = vld [vmem:[#allocation8 + $0x5c] sm:$0xf]
    %v2114 = vld [vmem:[#allocation8 + $0x60] sm:$0xf]
    %v2115 = vld [vmem:[#allocation8 + $0x64] sm:$0xf]
    %v2116 = vld [vmem:[#allocation8 + $0x68] sm:$0xf]
    %v2117 = vld [vmem:[#allocation8 + $0x6c] sm:$0xf]
    %v2118 = vld [vmem:[#allocation8 + $0x70] sm:$0xf]
    %v2119 = vld [vmem:[#allocation8 + $0x74] sm:$0xf]
    %v2120 = vld [vmem:[#allocation8 + $0x78] sm:$0xf]
    %v2121 = vld [vmem:[#allocation8 + $0x7c] sm:$0xf]
    %v2122 = vld [vmem:[#allocation8 + $0x80] sm:$0xf]
    %v2123 = vld [vmem:[#allocation8 + $0x84] sm:$0xf]
    %v2124 = vld [vmem:[#allocation8 + $0x88] sm:$0xf]
    %v2125 = vld [vmem:[#allocation8 + $0x8c] sm:$0xf]
    %v2126 = vld [vmem:[#allocation8 + $0x90] sm:$0xf]
    %v2127 = vld [vmem:[#allocation8 + $0x94] sm:$0xf]
    %v2128 = vld [vmem:[#allocation8 + $0x98] sm:$0xf]
    %v2129 = vld [vmem:[#allocation8 + $0x9c] sm:$0xf]
    %v2130 = vld [vmem:[#allocation8 + $0xa0] sm:$0xf]
    %v2131 = vld [vmem:[#allocation8 + $0xa4] sm:$0xf]
    %v2132 = vld [vmem:[#allocation8 + $0xa8] sm:$0xf]
    %v2133 = vld [vmem:[#allocation8 + $0xac] sm:$0xf]
    %v2134 = vld [vmem:[#allocation8 + $0xb0] sm:$0xf]
    %v2135 = vld [vmem:[#allocation8 + $0xb4] sm:$0xf]
    %v2136 = vld [vmem:[#allocation8 + $0xb8] sm:$0xf]
    %v2137 = vld [vmem:[#allocation8 + $0xbc] sm:$0xf]
    %v2138 = vld [vmem:[#allocation8 + $0xc0] sm:$0xf]
    %v2139 = vld [vmem:[#allocation8 + $0xc4] sm:$0xf]
    %v2140 = vld [vmem:[#allocation8 + $0xc8] sm:$0xf]
    %v2141 = vld [vmem:[#allocation8 + $0xcc] sm:$0xf]
    %v2142 = vld [vmem:[#allocation8 + $0xd0] sm:$0xf]
    %v2143 = vld [vmem:[#allocation8 + $0xd4] sm:$0xf]
    %v2144 = vld [vmem:[#allocation8 + $0xd8] sm:$0xf]
    %v2145 = vld [vmem:[#allocation8 + $0xdc] sm:$0xf]
    %v2146 = vld [vmem:[#allocation8 + $0xe0] sm:$0xf]
    %v2147 = vld [vmem:[#allocation8 + $0xe4] sm:$0xf]
    %v2148 = vld [vmem:[#allocation8 + $0xe8] sm:$0xf]
    %v2149 = vld [vmem:[#allocation8 + $0xec] sm:$0xf]
    %v2150 = vld [vmem:[#allocation8 + $0xf0] sm:$0xf]
    %v2151 = vld [vmem:[#allocation8 + $0xf4] sm:$0xf]
    %v2152 = vld [vmem:[#allocation8 + $0xf8] sm:$0xf]
    %v2153 = vld [vmem:[#allocation8 + $0xfc] sm:$0xf]
    %v2154 = vld [vmem:[%s4] sm:$0x1]
    %v2156 = vperm.slane %v2154, 0
    %v2222 = vunpack.c.l.b16 %v2090
    %v2223 = vunpack.c.l.b16 %v2091
    %v2224 = vunpack.c.l.b16 %v2092
    %v2225 = vunpack.c.l.b16 %v2093
    %v2226 = vunpack.c.l.b16 %v2094
    %v2227 = vunpack.c.l.b16 %v2095
    %v2228 = vunpack.c.l.b16 %v2096
    %v2229 = vunpack.c.l.b16 %v2097
    %v2230 = vunpack.c.l.b16 %v2098
    %v2231 = vunpack.c.l.b16 %v2099
    %v2232 = vunpack.c.l.b16 %v2100
    %v2233 = vunpack.c.l.b16 %v2101
    %v2234 = vunpack.c.l.b16 %v2102
    %v2235 = vunpack.c.l.b16 %v2103
    %v2236 = vunpack.c.l.b16 %v2104
    %v2237 = vunpack.c.l.b16 %v2105
    %v2238 = vunpack.c.l.b16 %v2106
    %v2239 = vunpack.c.l.b16 %v2107
    %v2240 = vunpack.c.l.b16 %v2108
    %v2241 = vunpack.c.l.b16 %v2109
    %v2242 = vunpack.c.l.b16 %v2110
    %v2243 = vunpack.c.l.b16 %v2111
    %v2244 = vunpack.c.l.b16 %v2112
    %v2245 = vunpack.c.l.b16 %v2113
    %v2246 = vunpack.c.l.b16 %v2114
    %v2247 = vunpack.c.l.b16 %v2115
    %v2248 = vunpack.c.l.b16 %v2116
    %v2249 = vunpack.c.l.b16 %v2117
    %v2250 = vunpack.c.l.b16 %v2118
    %v2251 = vunpack.c.l.b16 %v2119
    %v2252 = vunpack.c.l.b16 %v2120
    %v2253 = vunpack.c.l.b16 %v2121
    %v2254 = vunpack.c.l.b16 %v2122
    %v2255 = vunpack.c.l.b16 %v2123
    %v2256 = vunpack.c.l.b16 %v2124
    %v2257 = vunpack.c.l.b16 %v2125
    %v2258 = vunpack.c.l.b16 %v2126
    %v2259 = vunpack.c.l.b16 %v2127
    %v2260 = vunpack.c.l.b16 %v2128
    %v2261 = vunpack.c.l.b16 %v2129
    %v2262 = vunpack.c.l.b16 %v2130
    %v2263 = vunpack.c.l.b16 %v2131
    %v2264 = vunpack.c.l.b16 %v2132
    %v2265 = vunpack.c.l.b16 %v2133
    %v2266 = vunpack.c.l.b16 %v2134
    %v2267 = vunpack.c.l.b16 %v2135
    %v2268 = vunpack.c.l.b16 %v2136
    %v2269 = vunpack.c.l.b16 %v2137
    %v2270 = vunpack.c.l.b16 %v2138
    %v2271 = vunpack.c.l.b16 %v2139
    %v2272 = vunpack.c.l.b16 %v2140
    %v2273 = vunpack.c.l.b16 %v2141
    %v2274 = vunpack.c.l.b16 %v2142
    %v2275 = vunpack.c.l.b16 %v2143
    %v2276 = vunpack.c.l.b16 %v2144
    %v2277 = vunpack.c.l.b16 %v2145
    %v2278 = vunpack.c.l.b16 %v2146
    %v2279 = vunpack.c.l.b16 %v2147
    %v2280 = vunpack.c.l.b16 %v2148
    %v2281 = vunpack.c.l.b16 %v2149
    %v2282 = vunpack.c.l.b16 %v2150
    %v2283 = vunpack.c.l.b16 %v2151
    %v2284 = vunpack.c.l.b16 %v2152
    %v2285 = vunpack.c.l.b16 %v2153
    %v2286 = vpack.c.b16 %v2223, %v2222
    %v2287 = vpack.c.b16 %v2225, %v2224
    %v2288 = vpack.c.b16 %v2227, %v2226
    %v2289 = vpack.c.b16 %v2229, %v2228
    %v2290 = vpack.c.b16 %v2231, %v2230
    %v2291 = vpack.c.b16 %v2233, %v2232
    %v2292 = vpack.c.b16 %v2235, %v2234
    %v2293 = vpack.c.b16 %v2237, %v2236
    %v2294 = vpack.c.b16 %v2239, %v2238
    %v2295 = vpack.c.b16 %v2241, %v2240
    %v2296 = vpack.c.b16 %v2243, %v2242
    %v2297 = vpack.c.b16 %v2245, %v2244
    %v2298 = vpack.c.b16 %v2247, %v2246
    %v2299 = vpack.c.b16 %v2249, %v2248
    %v2300 = vpack.c.b16 %v2251, %v2250
    %v2301 = vpack.c.b16 %v2253, %v2252
    %v2302 = vpack.c.b16 %v2255, %v2254
    %v2303 = vpack.c.b16 %v2257, %v2256
    %v2304 = vpack.c.b16 %v2259, %v2258
    %v2305 = vpack.c.b16 %v2261, %v2260
    %v2306 = vpack.c.b16 %v2263, %v2262
    %v2307 = vpack.c.b16 %v2265, %v2264
    %v2308 = vpack.c.b16 %v2267, %v2266
    %v2309 = vpack.c.b16 %v2269, %v2268
    %v2310 = vpack.c.b16 %v2271, %v2270
    %v2311 = vpack.c.b16 %v2273, %v2272
    %v2312 = vpack.c.b16 %v2275, %v2274
    %v2313 = vpack.c.b16 %v2277, %v2276
    %v2314 = vpack.c.b16 %v2279, %v2278
    %v2315 = vpack.c.b16 %v2281, %v2280
    %v2316 = vpack.c.b16 %v2283, %v2282
    %v2317 = vpack.c.b16 %v2285, %v2284
    %2350 = vmatpush.bf16.msra.mxu0 %v2293
    %2351 = vmatpush.bf16.msra.mxu0 %v2292
    %2352 = vmatpush.bf16.msra.mxu0 %v2291
    %2353 = vmatpush.bf16.msra.mxu0 %v2290
    %2354 = vmatpush.bf16.msra.mxu0 %v2289
    %2355 = vmatpush.bf16.msra.mxu0 %v2288
    %2356 = vmatpush.bf16.msra.mxu0 %v2287
    %2357 = vmatpush.bf16.msra.mxu0 %v2286
    %2358 = vmatmul.bf16.gmra.mxu0 %v2086
    %v2359 = vpop.f32.mrf.mxu0
    %v2360 = vadd.f32 %v2156, %v2359
    %v2361 = vpop.f32.mrf.mxu0
    %2362 = vdwg.mxu0
    %2363 = vmatpush.bf16.msra.mxu0 %v2301
    %2364 = vmatpush.bf16.msra.mxu0 %v2300
    %2365 = vmatpush.bf16.msra.mxu0 %v2299
    %2366 = vmatpush.bf16.msra.mxu0 %v2298
    %2367 = vmatpush.bf16.msra.mxu0 %v2297
    %2368 = vmatpush.bf16.msra.mxu0 %v2296
    %2369 = vmatpush.bf16.msra.mxu0 %v2295
    %2370 = vmatpush.bf16.msra.mxu0 %v2294
    %2371 = vmatmul.bf16.gmra.mxu0 %v2087
    %v2372 = vpop.f32.mrf.mxu0
    %v2373 = vadd.f32 %v2360, %v2372
    %v2374 = vpop.f32.mrf.mxu0
    %2375 = vdwg.mxu0
    %2376 = vmatpush.bf16.msra.mxu0 %v2309
    %2377 = vmatpush.bf16.msra.mxu0 %v2308
    %2378 = vmatpush.bf16.msra.mxu0 %v2307
    %2379 = vmatpush.bf16.msra.mxu0 %v2306
    %2380 = vmatpush.bf16.msra.mxu0 %v2305
    %2381 = vmatpush.bf16.msra.mxu0 %v2304
    %2382 = vmatpush.bf16.msra.mxu0 %v2303
    %2383 = vmatpush.bf16.msra.mxu0 %v2302
    %2384 = vmatmul.bf16.gmra.mxu0 %v2088
    %v2385 = vpop.f32.mrf.mxu0
    %v2386 = vadd.f32 %v2373, %v2385
    %v2387 = vpop.f32.mrf.mxu0
    %2388 = vdwg.mxu0
    %2389 = vmatpush.bf16.msra.mxu0 %v2317
    %2390 = vmatpush.bf16.msra.mxu0 %v2316
    %2391 = vmatpush.bf16.msra.mxu0 %v2315
    %2392 = vmatpush.bf16.msra.mxu0 %v2314
    %2393 = vmatpush.bf16.msra.mxu0 %v2313
    %2394 = vmatpush.bf16.msra.mxu0 %v2312
    %2395 = vmatpush.bf16.msra.mxu0 %v2311
    %2396 = vmatpush.bf16.msra.mxu0 %v2310
    %2397 = vmatmul.bf16.gmra.mxu0 %v2089
    %v2398 = vpop.f32.mrf.mxu0
    %v2399 = vadd.f32 %v2386, %v2398
    %v2400 = vpop.f32.mrf.mxu0
    %2401 = vdwg.mxu0
    %v2402 = vmax.f32 %v2399, 0.0
    %v2403 = vpack.c.bf16 %v2402, %v2402
    %v2404 = vld [vmem:[#allocation10] sm:$0xf]
    %v2405 = vld [vmem:[#allocation10 + $0x4] sm:$0xf]
    %v2406 = vld [vmem:[#allocation10 + $0x8] sm:$0xf]
    %v2407 = vld [vmem:[#allocation10 + $0xc] sm:$0xf]
    %v2408 = vld [vmem:[#allocation10 + $0x10] sm:$0xf]
    %v2409 = vld [vmem:[#allocation10 + $0x14] sm:$0xf]
    %v2410 = vld [vmem:[#allocation10 + $0x18] sm:$0xf]
    %v2411 = vld [vmem:[#allocation10 + $0x1c] sm:$0xf]
    %v2412 = vld [vmem:[#allocation10 + $0x20] sm:$0xf]
    %v2413 = vld [vmem:[#allocation10 + $0x24] sm:$0xf]
    %v2414 = vld [vmem:[#allocation10 + $0x28] sm:$0xf]
    %v2415 = vld [vmem:[#allocation10 + $0x2c] sm:$0xf]
    %v2416 = vld [vmem:[#allocation10 + $0x30] sm:$0xf]
    %v2417 = vld [vmem:[#allocation10 + $0x34] sm:$0xf]
    %v2418 = vld [vmem:[#allocation10 + $0x38] sm:$0xf]
    %v2419 = vld [vmem:[#allocation10 + $0x3c] sm:$0xf]
    %v2420 = vld [vmem:[%s6] sm:$0x1]
    %v2422 = vperm.slane %v2420, 0
    %v2440 = vunpack.c.l.b16 %v2404
    %v2441 = vunpack.c.l.b16 %v2405
    %v2442 = vunpack.c.l.b16 %v2406
    %v2443 = vunpack.c.l.b16 %v2407
    %v2444 = vunpack.c.l.b16 %v2408
    %v2445 = vunpack.c.l.b16 %v2409
    %v2446 = vunpack.c.l.b16 %v2410
    %v2447 = vunpack.c.l.b16 %v2411
    %v2448 = vunpack.c.l.b16 %v2412
    %v2449 = vunpack.c.l.b16 %v2413
    %v2450 = vunpack.c.l.b16 %v2414
    %v2451 = vunpack.c.l.b16 %v2415
    %v2452 = vunpack.c.l.b16 %v2416
    %v2453 = vunpack.c.l.b16 %v2417
    %v2454 = vunpack.c.l.b16 %v2418
    %v2455 = vunpack.c.l.b16 %v2419
    %v2456 = vpack.c.b16 %v2441, %v2440
    %v2457 = vpack.c.b16 %v2443, %v2442
    %v2458 = vpack.c.b16 %v2445, %v2444
    %v2459 = vpack.c.b16 %v2447, %v2446
    %v2460 = vpack.c.b16 %v2449, %v2448
    %v2461 = vpack.c.b16 %v2451, %v2450
    %v2462 = vpack.c.b16 %v2453, %v2452
    %v2463 = vpack.c.b16 %v2455, %v2454
    %2472 = vmatpush.bf16.msra.mxu0 %v2463
    %2473 = vmatpush.bf16.msra.mxu0 %v2462
    %2474 = vmatpush.bf16.msra.mxu0 %v2461
    %2475 = vmatpush.bf16.msra.mxu0 %v2460
    %2476 = vmatpush.bf16.msra.mxu0 %v2459
    %2477 = vmatpush.bf16.msra.mxu0 %v2458
    %2478 = vmatpush.bf16.msra.mxu0 %v2457
    %2479 = vmatpush.bf16.msra.mxu0 %v2456
    %2480 = vmatmul.bf16.gmra.mxu0 %v2403
    %v2481 = vpop.f32.mrf.mxu0
    %v2482 = vadd.f32 %v2422, %v2481
    %v2483 = vpop.f32.mrf.mxu0
    %2484 = vdwg.mxu0
    %2485 = vst [vmem:[#allocation11] sm:$0x3] %v2482
    // Predicated region
    $region50: #{tpu_custom_call.1} parent=1 // pred_check
      _
    $region51: #{tpu_custom_call.1} parent=1 // pred_check_branch
      %2487 = sbr.rel (0) target = $region53
    $region52: #{tpu_custom_call.1} parent=1 // pred_region
      %2489 = vsyncadd [#allocation4], 0
      %s2491 = sshll.u32 [#allocation11], 4
      %s2492 = int_to_ptr.vmem [resolvable:$true] %s2491
      %s2493 = sshll.u32 %s7, 4
      %s2494 = int_to_ptr.hbm [resolvable:$true] %s2493
      %2496 = dma.vmem_to_hbm [thread:$0]  %s2492, 32, %s2494, [#allocation4]
    $region53: #{tpu_custom_call.1} parent=1 // pred_fallthru
      _
    // Predicated region
    $region54: #{tpu_custom_call.1} parent=1 // pred_check
      _
    $region55: #{tpu_custom_call.1} parent=1 // pred_check_branch
      %2498 = sbr.rel (0) target = $region57
    $region56: #{tpu_custom_call.1} parent=1 // pred_region
      %2500 = dma.done [#allocation4], 32
    $region57: #{tpu_custom_call.1} parent=1 // pred_fallthru
      _
    %2501 = vsyncpa [#allocation3], 1
    %2502 = vsyncpa [#allocation6], 1
    %2503 = vsyncpa [#allocation9], 1
    %2504 = vsyncpa [#allocation4], 1

</llo_original>
